<compile_context>
chip_gen: v7x
topology: tpu7x:2x2x1
jax: 0.10.0
libtpu: 0.0.40
codegen_flags: <defaults>
</compile_context>

<pallas_src>
import functools
import math

import jax
import jax.numpy as jnp
from jax import lax
from jax.experimental import pallas as pl
from jax.experimental.pallas import tpu as pltpu

LN_EPS = 1e-5
MATMUL_DTYPE = jnp.bfloat16   # MXU operand dtype; accumulation is always f32.


def _layernorm(x, gamma, beta):
    # x: (M, C), gamma/beta: (1, C).  Biased variance, matching PyTorch LayerNorm.  f32 math.
    mean = jnp.mean(x, axis=-1, keepdims=True)
    var = jnp.mean((x - mean) ** 2, axis=-1, keepdims=True)
    return (x - mean) * lax.rsqrt(var + LN_EPS) * gamma + beta


def _gelu_exact(x):
    # nn.GELU default: exact erf formulation (f32).
    return 0.5 * x * (1.0 + lax.erf(x * (1.0 / math.sqrt(2.0))))


def decoder_block_kernel(
    q_ref, kv_ref, mask_ref,
    g21_ref, b21_ref, g22_ref, b22_ref,
    wq_ref, wk_ref, wv_ref, wproj_ref, bproj_ref,
    g2_ref, b2_ref,
    w1_ref, b1_ref, w2_ref, b2m_ref,
    out_ref,
    *, block_b, seq_len, num_heads,
):
    N, H = seq_len, num_heads
    qin = q_ref[...]                         # (M, C) f32, M = block_b * N, rows ordered (b, n)
    kvin = kv_ref[...]                       # (M, C) f32
    M, C = qin.shape
    D = C // H

    # ---------------- CrossAttention ----------------
    qn = _layernorm(qin, g21_ref[...], b21_ref[...]).astype(MATMUL_DTYPE)    # norm2_1(q)
    kvn = _layernorm(kvin, g22_ref[...], b22_ref[...]).astype(MATMUL_DTYPE)  # norm2_2(kv)

    # Dense (M, C) projections; qk scale is pre-folded into Wq host-side.
    qp = jnp.dot(qn, wq_ref[...], preferred_element_type=jnp.float32)   # (M, C)
    kp = jnp.dot(kvn, wk_ref[...], preferred_element_type=jnp.float32)  # (M, C)
    vp = jnp.dot(kvn, wv_ref[...], preferred_element_type=jnp.float32)  # (M, C)

    # Head split -> (block_b*H, N, D) head-batched layout.  Value-level static slices +
    # leading-axis stack: no narrow masked stores to VMEM scratch.
    def split_heads(x):
        return jnp.stack(
            [x[b * N:(b + 1) * N, h * D:(h + 1) * D]
             for b in range(block_b) for h in range(H)], axis=0)

    qh = split_heads(qp).astype(MATMUL_DTYPE)   # (block_b*H, N, D)
    kh = split_heads(kp).astype(MATMUL_DTYPE)
    vh = split_heads(vp).astype(MATMUL_DTYPE)

    # Scores and PV for all (batch, head) pairs in two batched matmuls.
    s = jnp.einsum('bqd,bkd->bqk', qh, kh,
                   preferred_element_type=jnp.float32)          # (block_b*H, N, N)
    s = s.reshape(block_b, H, N, N) + mask_ref[...][:, None]    # mask broadcasts over heads
    s = s - jnp.max(s, axis=-1, keepdims=True)
    p = jnp.exp(s)
    p = p * pl.reciprocal(jnp.sum(p, axis=-1, keepdims=True), approx=True)
    p = p.reshape(block_b * H, N, N).astype(MATMUL_DTYPE)

    o = jnp.einsum('bqk,bkd->bqd', p, vh,
                   preferred_element_type=jnp.float32)          # (block_b*H, N, D)

    # Output projection fed straight from the head-batched PV result:
    #   concat_h(o_h) @ Wproj == sum_h o_h @ Wproj[h*D:(h+1)*D, :]
    # -> no attn_buf scratch, accumulation stays full (M, C) lane width.
    o4 = o.reshape(block_b, H, N, D)
    wproj = wproj_ref[...]                                      # (C, C) bf16, (in, out)
    attn_out = bproj_ref[...]                                   # (1, C) f32, broadcasts to (M, C)
    for h in range(H):
        o_h = o4[:, h].reshape(M, D).astype(MATMUL_DTYPE)       # rows ordered (b, n) like qin
        attn_out = attn_out + jnp.dot(o_h, wproj[h * D:(h + 1) * D, :],
                                      preferred_element_type=jnp.float32)

    q1 = qin + attn_out                                         # first residual (f32)

    # ---------------- MLP ----------------
    xn = _layernorm(q1, g2_ref[...], b2_ref[...]).astype(MATMUL_DTYPE)       # norm2
    h1 = jnp.dot(xn, w1_ref[...], preferred_element_type=jnp.float32) + b1_ref[...]
    h1 = _gelu_exact(h1).astype(MATMUL_DTYPE)
    h2 = jnp.dot(h1, w2_ref[...], preferred_element_type=jnp.float32) + b2m_ref[...]

    out_ref[...] = q1 + h2                                      # second residual, lane-dense store


def prepare_params(raw, *, num_heads, matmul_dtype=MATMUL_DTYPE):
    """One-time host-side weight prep (call once, reuse across forwards):
    (out,in)->(in,out) transposes, Wkv split into Wk/Wv, qk scale folded into Wq,
    matmul weights cast to bf16; LN params and biases stay f32 row vectors."""
    C = raw["wq"].shape[0]
    assert C % num_heads == 0, "dim must be divisible by num_heads"
    D = C // num_heads
    scale = D ** (-0.5)
    row = lambda v: jnp.asarray(v, jnp.float32).reshape(1, -1)
    return {
        "g21": row(raw["g21"]), "b21": row(raw["b21"]),
        "g22": row(raw["g22"]), "b22": row(raw["b22"]),
        "g2": row(raw["g2"]), "b2": row(raw["b2"]),
        "wq_t": (jnp.transpose(raw["wq"]) * scale).astype(matmul_dtype),   # (C, C), scale folded
        "wk_t": jnp.transpose(raw["wkv"][:C]).astype(matmul_dtype),        # (C, C)
        "wv_t": jnp.transpose(raw["wkv"][C:]).astype(matmul_dtype),        # (C, C)
        "wproj_t": jnp.transpose(raw["wproj"]).astype(matmul_dtype),       # (C, C)
        "bproj": row(raw["bproj"]),
        "w1_t": jnp.transpose(raw["w1"]).astype(matmul_dtype),             # (C, H_mlp)
        "b1": row(raw["b1"]),
        "w2_t": jnp.transpose(raw["w2"]).astype(matmul_dtype),             # (H_mlp, C)
        "b2m": row(raw["b2m"]),
    }


def _choose_block_b(B, N, target_rows=256):
    # Fold enough samples per grid step that matmuls see >= ~256 rows, but keep the grid
    # length >= 2 when B >= 2 so v7x's two TensorCores both get work ("parallel" axis).
    if N % 8 != 0:
        return B  # one full-array block: avoids the (8,128) block-divisibility constraint
    bb = max(1, min(B, max(1, target_rows // N)))
    if B >= 2:
        bb = min(bb, max(1, B // 2))
    while B % bb:
        bb -= 1
    return bb


def _vmem_limit_bytes(block_b, N, C, H_mlp, num_heads):
    f32b, bf16b = 4, 2
    M = block_b * N
    # Grid-invariant weights/biases (default pipeline still allocates two buffers each).
    weights = (4 * C * C + 2 * C * H_mlp) * bf16b + (8 * C + H_mlp) * f32b
    # Streamed per-step blocks (q, kv, out, mask), double-buffered.
    stream = 2 * (3 * M * C + block_b * N * N) * f32b
    # Peak live in-kernel values (projections, scores/probs, PV, residuals, MLP hidden).
    live = (8 * M * C + 3 * block_b * num_heads * N * N + 2 * M * H_mlp) * f32b
    need = 2 * weights + stream + live
    try:
        phys = pltpu.get_tpu_info().vmem_capacity_bytes   # 128 MiB v5e/v6e, 64 MiB v7x
    except Exception:
        phys = 128 * 1024 * 1024
    cap = int(0.85 * phys)                                # headroom for Mosaic-internal scratch
    return int(min(cap, max(32 * 1024 * 1024, need)))


def decoder_block(q, kv, mask, pp, *, num_heads, block_b=None):
    B, N, C = q.shape
    assert kv.shape == (B, N, C), "q and kv must share (B, N, C)"
    assert mask.shape == (B, 1, N, N), "mask must be (B, 1, N, N)"
    assert C % num_heads == 0, "dim must be divisible by num_heads"
    H_mlp = pp["w1_t"].shape[1]

    if block_b is None:
        block_b = _choose_block_b(B, N)
    if N % 8 != 0:
        block_b = B
    assert B % block_b == 0
    grid = (B // block_b,)
    M = block_b * N

    # Host-side layout plumbing: fold batch into rows so in-kernel matmuls see (M, C)
    # operands and the output block is sublane/lane-dense.
    q2 = q.reshape(B * N, C)
    kv2 = kv.reshape(B * N, C)
    mask3 = mask.reshape(B, N, N)

    row_spec = pl.BlockSpec((M, C), lambda i: (i, 0))
    full = lambda shape: pl.BlockSpec(shape, lambda i: (0,) * len(shape))

    kernel = functools.partial(decoder_block_kernel, block_b=block_b,
                               seq_len=N, num_heads=num_heads)

    out = pl.pallas_call(
        kernel,
        out_shape=jax.ShapeDtypeStruct((B * N, C), jnp.float32),
        grid_spec=pltpu.PrefetchScalarGridSpec(
            num_scalar_prefetch=0,
            grid=grid,
            in_specs=[
                row_spec,                                             # q   (flattened rows)
                row_spec,                                             # kv
                pl.BlockSpec((block_b, N, N), lambda i: (i, 0, 0)),   # mask
                full((1, C)), full((1, C)),                           # norm2_1 gamma / beta
                full((1, C)), full((1, C)),                           # norm2_2 gamma / beta
                full((C, C)), full((C, C)), full((C, C)),             # Wq^T*scale, Wk^T, Wv^T (bf16)
                full((C, C)), full((1, C)),                           # Wproj^T (bf16), bproj
                full((1, C)), full((1, C)),                           # norm2 gamma / beta
                full((C, H_mlp)), full((1, H_mlp)),                   # W1^T (bf16), b1
                full((H_mlp, C)), full((1, C)),                       # W2^T (bf16), b2
            ],
            out_specs=row_spec,
        ),
        compiler_params=pltpu.CompilerParams(
            dimension_semantics=("parallel",),
            vmem_limit_bytes=_vmem_limit_bytes(block_b, N, C, H_mlp, num_heads),
        ),
    )(q2, kv2, mask3,
      pp["g21"], pp["b21"], pp["g22"], pp["b22"],
      pp["wq_t"], pp["wk_t"], pp["wv_t"], pp["wproj_t"], pp["bproj"],
      pp["g2"], pp["b2"],
      pp["w1_t"], pp["b1"], pp["w2_t"], pp["b2m"])
    return out.reshape(B, N, C)


# --------- pure-JAX f32 reference (mirrors the PyTorch forward) ---------
def decoder_block_ref(q, kv, mask, p, *, num_heads):
    B, N, C = q.shape
    D = C // num_heads
    scale = D ** (-0.5)

    def ln(x, g, b):
        m = jnp.mean(x, axis=-1, keepdims=True)
        v = jnp.mean((x - m) ** 2, axis=-1, keepdims=True)
        return (x - m) / jnp.sqrt(v + LN_EPS) * g + b

    qn = ln(q, p["g21"], p["b21"])
    kvn = ln(kv, p["g22"], p["b22"])
    qp = qn @ p["wq"].T                              # (B, N, C)
    kvp = kvn @ p["wkv"].T                           # (B, N, 2C)
    qh = qp.reshape(B, N, num_heads, D).transpose(0, 2, 1, 3)            # (B, H, N, D)
    kh = kvp[..., :C].reshape(B, N, num_heads, D).transpose(0, 2, 1, 3)
    vh = kvp[..., C:].reshape(B, N, num_heads, D).transpose(0, 2, 1, 3)
    attn = (qh @ jnp.swapaxes(kh, -2, -1)) * scale + mask                # (B, H, N, N)
    attn = jax.nn.softmax(attn, axis=-1)
    x = (attn @ vh).transpose(0, 2, 1, 3).reshape(B, N, C)
    x = x @ p["wproj"].T + p["bproj"]
    q1 = q + x
    xn = ln(q1, p["g2"], p["b2"])
    h = xn @ p["w1"].T + p["b1"]
    h = 0.5 * h * (1.0 + lax.erf(h / math.sqrt(2.0)))
    h = h @ p["w2"].T + p["b2m"]
    return q1 + h


if __name__ == "__main__":
    B, N, C = 2, 8, 32
    num_heads = 4
    mlp_hidden = int(C * 4.0)

    key = jax.random.PRNGKey(0)
    keys = jax.random.split(key, 12)

    q = jax.random.normal(keys[0], (B, N, C), dtype=jnp.float32)
    kv = jax.random.normal(keys[1], (B, N, C), dtype=jnp.float32)
    mask = 0.1 * jax.random.normal(keys[2], (B, 1, N, N), dtype=jnp.float32)

    def w(k, shape, s=0.05):
        return s * jax.random.normal(k, shape, dtype=jnp.float32)

    raw_params = {
        # LayerNorm params (row vectors)
        "g21": jnp.ones((1, C), jnp.float32), "b21": jnp.zeros((1, C), jnp.float32),
        "g22": jnp.ones((1, C), jnp.float32), "b22": jnp.zeros((1, C), jnp.float32),
        "g2":  jnp.ones((1, C), jnp.float32), "b2":  jnp.zeros((1, C), jnp.float32),
        # CrossAttention weights (PyTorch Linear convention: (out, in))
        "wq": w(keys[3], (C, C)),
        "wkv": w(keys[4], (2 * C, C)),
        "wproj": w(keys[5], (C, C)),
        "bproj": w(keys[6], (1, C)),
        # MLP weights
        "w1": w(keys[7], (mlp_hidden, C)),
        "b1": w(keys[8], (1, mlp_hidden)),
        "w2": w(keys[9], (C, mlp_hidden)),
        "b2m": w(keys[10], (1, C)),
    }

    pp = prepare_params(raw_params, num_heads=num_heads)   # one-time host-side weight prep
    out = decoder_block(q, kv, mask, pp, num_heads=num_heads)
    out = jax.block_until_ready(out)

    ref = decoder_block_ref(q, kv, mask, raw_params, num_heads=num_heads)
    assert out.shape == (B, N, C)
    # Tolerance accommodates bf16 MXU operands (f32 accumulation) and the approximate
    # (EUP) softmax reciprocal; typical max-abs error at these shapes is ~1e-3.
    max_err = float(jnp.max(jnp.abs(out - ref)))
    assert jnp.allclose(out, ref, atol=1e-2, rtol=1e-2), (
        f"mismatch vs reference (max abs err = {max_err:.3e})")

    print("KERNEL_OK")
</pallas_src>

<mosaic_0001>
module attributes {stable_mosaic.version = 11 : i64} {
  func.func @decoder_block_kernel(%arg0: i32, %arg1: memref<8x32xf32, #tpu.memory_space<vmem>>, %arg2: memref<8x32xf32, #tpu.memory_space<vmem>>, %arg3: memref<1x8x8xf32, #tpu.memory_space<vmem>>, %arg4: memref<1x32xf32, #tpu.memory_space<vmem>>, %arg5: memref<1x32xf32, #tpu.memory_space<vmem>>, %arg6: memref<1x32xf32, #tpu.memory_space<vmem>>, %arg7: memref<1x32xf32, #tpu.memory_space<vmem>>, %arg8: memref<32x32xbf16, #tpu.memory_space<vmem>>, %arg9: memref<32x32xbf16, #tpu.memory_space<vmem>>, %arg10: memref<32x32xbf16, #tpu.memory_space<vmem>>, %arg11: memref<32x32xbf16, #tpu.memory_space<vmem>>, %arg12: memref<1x32xf32, #tpu.memory_space<vmem>>, %arg13: memref<1x32xf32, #tpu.memory_space<vmem>>, %arg14: memref<1x32xf32, #tpu.memory_space<vmem>>, %arg15: memref<32x128xbf16, #tpu.memory_space<vmem>>, %arg16: memref<1x128xf32, #tpu.memory_space<vmem>>, %arg17: memref<128x32xbf16, #tpu.memory_space<vmem>>, %arg18: memref<1x32xf32, #tpu.memory_space<vmem>>, %arg19: memref<8x32xf32, #tpu.memory_space<vmem>>) attributes {dimension_semantics = [#tpu.dimension_semantics<parallel>], iteration_bounds = array<i64: 2>, scalar_prefetch = 0 : i64, scratch_operands = 0 : i64, tpu.core_type = #tpu.core_type<tc>, window_params = [{transform_indices = @transform_0, window_bounds = array<i64: 8, 32>}, {transform_indices = @transform_1, window_bounds = array<i64: 8, 32>}, {transform_indices = @transform_2, window_bounds = array<i64: 1, 8, 8>}, {pipeline_mode = #tpu.pipeline_mode<synchronous>, transform_indices = @transform_3, window_bounds = array<i64: 1, 32>}, {pipeline_mode = #tpu.pipeline_mode<synchronous>, transform_indices = @transform_4, window_bounds = array<i64: 1, 32>}, {pipeline_mode = #tpu.pipeline_mode<synchronous>, transform_indices = @transform_5, window_bounds = array<i64: 1, 32>}, {pipeline_mode = #tpu.pipeline_mode<synchronous>, transform_indices = @transform_6, window_bounds = array<i64: 1, 32>}, {pipeline_mode = #tpu.pipeline_mode<synchronous>, transform_indices = @transform_7, window_bounds = array<i64: 32, 32>}, {pipeline_mode = #tpu.pipeline_mode<synchronous>, transform_indices = @transform_8, window_bounds = array<i64: 32, 32>}, {pipeline_mode = #tpu.pipeline_mode<synchronous>, transform_indices = @transform_9, window_bounds = array<i64: 32, 32>}, {pipeline_mode = #tpu.pipeline_mode<synchronous>, transform_indices = @transform_10, window_bounds = array<i64: 32, 32>}, {pipeline_mode = #tpu.pipeline_mode<synchronous>, transform_indices = @transform_11, window_bounds = array<i64: 1, 32>}, {pipeline_mode = #tpu.pipeline_mode<synchronous>, transform_indices = @transform_12, window_bounds = array<i64: 1, 32>}, {pipeline_mode = #tpu.pipeline_mode<synchronous>, transform_indices = @transform_13, window_bounds = array<i64: 1, 32>}, {pipeline_mode = #tpu.pipeline_mode<synchronous>, transform_indices = @transform_14, window_bounds = array<i64: 32, 128>}, {pipeline_mode = #tpu.pipeline_mode<synchronous>, transform_indices = @transform_15, window_bounds = array<i64: 1, 128>}, {pipeline_mode = #tpu.pipeline_mode<synchronous>, transform_indices = @transform_16, window_bounds = array<i64: 128, 32>}, {pipeline_mode = #tpu.pipeline_mode<synchronous>, transform_indices = @transform_17, window_bounds = array<i64: 1, 32>}, {transform_indices = @transform_18, window_bounds = array<i64: 8, 32>}]} {
    %c0 = arith.constant 0 : index
    %c0_0 = arith.constant 0 : index
    %0 = vector.load %arg1[%c0, %c0_0] : memref<8x32xf32, #tpu.memory_space<vmem>>, vector<8x32xf32>
    %c0_1 = arith.constant 0 : index
    %c0_2 = arith.constant 0 : index
    %1 = vector.load %arg2[%c0_1, %c0_2] : memref<8x32xf32, #tpu.memory_space<vmem>>, vector<8x32xf32>
    %c0_3 = arith.constant 0 : index
    %c0_4 = arith.constant 0 : index
    %2 = vector.load %arg4[%c0_3, %c0_4] : memref<1x32xf32, #tpu.memory_space<vmem>>, vector<1x32xf32>
    %c0_5 = arith.constant 0 : index
    %c0_6 = arith.constant 0 : index
    %3 = vector.load %arg5[%c0_5, %c0_6] : memref<1x32xf32, #tpu.memory_space<vmem>>, vector<1x32xf32>
    %cst = arith.constant dense<0.000000e+00> : vector<8xf32>
    %4 = vector.multi_reduction <add>, %0, %cst [1] : vector<8x32xf32> to vector<8xf32>
    %5 = vector.shape_cast %4 : vector<8xf32> to vector<8x1xf32>
    %cst_7 = arith.constant 3.200000e+01 : f32
    %6 = vector.broadcast %cst_7 : f32 to vector<8x1xf32>
    %7 = arith.divf %5, %6 : vector<8x1xf32>
    %8 = vector.broadcast %7 : vector<8x1xf32> to vector<8x32xf32>
    %9 = arith.subf %0, %8 : vector<8x32xf32>
    %10 = arith.mulf %9, %9 : vector<8x32xf32>
    %cst_8 = arith.constant dense<0.000000e+00> : vector<8xf32>
    %11 = vector.multi_reduction <add>, %10, %cst_8 [1] : vector<8x32xf32> to vector<8xf32>
    %12 = vector.shape_cast %11 : vector<8xf32> to vector<8x1xf32>
    %cst_9 = arith.constant 3.200000e+01 : f32
    %13 = vector.broadcast %cst_9 : f32 to vector<8x1xf32>
    %14 = arith.divf %12, %13 : vector<8x1xf32>
    %15 = vector.broadcast %7 : vector<8x1xf32> to vector<8x32xf32>
    %16 = arith.subf %0, %15 : vector<8x32xf32>
    %cst_10 = arith.constant 9.99999974E-6 : f32
    %17 = vector.broadcast %cst_10 : f32 to vector<8x1xf32>
    %18 = arith.addf %14, %17 : vector<8x1xf32>
    %19 = math.rsqrt %18 : vector<8x1xf32>
    %20 = vector.broadcast %19 : vector<8x1xf32> to vector<8x32xf32>
    %21 = arith.mulf %16, %20 : vector<8x32xf32>
    %22 = vector.broadcast %2 : vector<1x32xf32> to vector<8x32xf32>
    %23 = arith.mulf %21, %22 : vector<8x32xf32>
    %24 = vector.broadcast %3 : vector<1x32xf32> to vector<8x32xf32>
    %25 = arith.addf %23, %24 : vector<8x32xf32>
    %26 = arith.truncf %25 : vector<8x32xf32> to vector<8x32xbf16>
    %c0_11 = arith.constant 0 : index
    %c0_12 = arith.constant 0 : index
    %27 = vector.load %arg6[%c0_11, %c0_12] : memref<1x32xf32, #tpu.memory_space<vmem>>, vector<1x32xf32>
    %c0_13 = arith.constant 0 : index
    %c0_14 = arith.constant 0 : index
    %28 = vector.load %arg7[%c0_13, %c0_14] : memref<1x32xf32, #tpu.memory_space<vmem>>, vector<1x32xf32>
    %cst_15 = arith.constant dense<0.000000e+00> : vector<8xf32>
    %29 = vector.multi_reduction <add>, %1, %cst_15 [1] : vector<8x32xf32> to vector<8xf32>
    %30 = vector.shape_cast %29 : vector<8xf32> to vector<8x1xf32>
    %cst_16 = arith.constant 3.200000e+01 : f32
    %31 = vector.broadcast %cst_16 : f32 to vector<8x1xf32>
    %32 = arith.divf %30, %31 : vector<8x1xf32>
    %33 = vector.broadcast %32 : vector<8x1xf32> to vector<8x32xf32>
    %34 = arith.subf %1, %33 : vector<8x32xf32>
    %35 = arith.mulf %34, %34 : vector<8x32xf32>
    %cst_17 = arith.constant dense<0.000000e+00> : vector<8xf32>
    %36 = vector.multi_reduction <add>, %35, %cst_17 [1] : vector<8x32xf32> to vector<8xf32>
    %37 = vector.shape_cast %36 : vector<8xf32> to vector<8x1xf32>
    %cst_18 = arith.constant 3.200000e+01 : f32
    %38 = vector.broadcast %cst_18 : f32 to vector<8x1xf32>
    %39 = arith.divf %37, %38 : vector<8x1xf32>
    %40 = vector.broadcast %32 : vector<8x1xf32> to vector<8x32xf32>
    %41 = arith.subf %1, %40 : vector<8x32xf32>
    %cst_19 = arith.constant 9.99999974E-6 : f32
    %42 = vector.broadcast %cst_19 : f32 to vector<8x1xf32>
    %43 = arith.addf %39, %42 : vector<8x1xf32>
    %44 = math.rsqrt %43 : vector<8x1xf32>
    %45 = vector.broadcast %44 : vector<8x1xf32> to vector<8x32xf32>
    %46 = arith.mulf %41, %45 : vector<8x32xf32>
    %47 = vector.broadcast %27 : vector<1x32xf32> to vector<8x32xf32>
    %48 = arith.mulf %46, %47 : vector<8x32xf32>
    %49 = vector.broadcast %28 : vector<1x32xf32> to vector<8x32xf32>
    %50 = arith.addf %48, %49 : vector<8x32xf32>
    %51 = arith.truncf %50 : vector<8x32xf32> to vector<8x32xbf16>
    %c0_20 = arith.constant 0 : index
    %c0_21 = arith.constant 0 : index
    %52 = vector.load %arg8[%c0_20, %c0_21] : memref<32x32xbf16, #tpu.memory_space<vmem>>, vector<32x32xbf16>
    %cst_22 = arith.constant dense<0.000000e+00> : vector<8x32xf32>
    %53 = tpu.matmul %26, %52, %cst_22 {dimension_numbers = #tpu.dot_dimension_numbers<[1], [0], [0], [1], [0, 0, 1, 1], [], []>} : vector<8x32xbf16>, vector<32x32xbf16>, vector<8x32xf32> -> vector<8x32xf32>
    %c0_23 = arith.constant 0 : index
    %c0_24 = arith.constant 0 : index
    %54 = vector.load %arg9[%c0_23, %c0_24] : memref<32x32xbf16, #tpu.memory_space<vmem>>, vector<32x32xbf16>
    %cst_25 = arith.constant dense<0.000000e+00> : vector<8x32xf32>
    %55 = tpu.matmul %51, %54, %cst_25 {dimension_numbers = #tpu.dot_dimension_numbers<[1], [0], [0], [1], [0, 0, 1, 1], [], []>} : vector<8x32xbf16>, vector<32x32xbf16>, vector<8x32xf32> -> vector<8x32xf32>
    %c0_26 = arith.constant 0 : index
    %c0_27 = arith.constant 0 : index
    %56 = vector.load %arg10[%c0_26, %c0_27] : memref<32x32xbf16, #tpu.memory_space<vmem>>, vector<32x32xbf16>
    %cst_28 = arith.constant dense<0.000000e+00> : vector<8x32xf32>
    %57 = tpu.matmul %51, %56, %cst_28 {dimension_numbers = #tpu.dot_dimension_numbers<[1], [0], [0], [1], [0, 0, 1, 1], [], []>} : vector<8x32xbf16>, vector<32x32xbf16>, vector<8x32xf32> -> vector<8x32xf32>
    %58 = vector.extract_strided_slice %53 {offsets = [0, 0], sizes = [8, 8], strides = [1, 1]} : vector<8x32xf32> to vector<8x8xf32>
    %59 = vector.extract_strided_slice %53 {offsets = [0, 8], sizes = [8, 8], strides = [1, 1]} : vector<8x32xf32> to vector<8x8xf32>
    %60 = vector.extract_strided_slice %53 {offsets = [0, 16], sizes = [8, 8], strides = [1, 1]} : vector<8x32xf32> to vector<8x8xf32>
    %61 = vector.extract_strided_slice %53 {offsets = [0, 24], sizes = [8, 8], strides = [1, 1]} : vector<8x32xf32> to vector<8x8xf32>
    %62 = vector.shape_cast %58 : vector<8x8xf32> to vector<1x8x8xf32>
    %63 = vector.shape_cast %59 : vector<8x8xf32> to vector<1x8x8xf32>
    %64 = vector.shape_cast %60 : vector<8x8xf32> to vector<1x8x8xf32>
    %65 = vector.shape_cast %61 : vector<8x8xf32> to vector<1x8x8xf32>
    %66 = tpu.concatenate %62, %63, %64, %65 in 0 : vector<1x8x8xf32>, vector<1x8x8xf32>, vector<1x8x8xf32>, vector<1x8x8xf32> -> vector<4x8x8xf32>
    %67 = arith.truncf %66 : vector<4x8x8xf32> to vector<4x8x8xbf16>
    %68 = vector.extract_strided_slice %55 {offsets = [0, 0], sizes = [8, 8], strides = [1, 1]} : vector<8x32xf32> to vector<8x8xf32>
    %69 = vector.extract_strided_slice %55 {offsets = [0, 8], sizes = [8, 8], strides = [1, 1]} : vector<8x32xf32> to vector<8x8xf32>
    %70 = vector.extract_strided_slice %55 {offsets = [0, 16], sizes = [8, 8], strides = [1, 1]} : vector<8x32xf32> to vector<8x8xf32>
    %71 = vector.extract_strided_slice %55 {offsets = [0, 24], sizes = [8, 8], strides = [1, 1]} : vector<8x32xf32> to vector<8x8xf32>
    %72 = vector.shape_cast %68 : vector<8x8xf32> to vector<1x8x8xf32>
    %73 = vector.shape_cast %69 : vector<8x8xf32> to vector<1x8x8xf32>
    %74 = vector.shape_cast %70 : vector<8x8xf32> to vector<1x8x8xf32>
    %75 = vector.shape_cast %71 : vector<8x8xf32> to vector<1x8x8xf32>
    %76 = tpu.concatenate %72, %73, %74, %75 in 0 : vector<1x8x8xf32>, vector<1x8x8xf32>, vector<1x8x8xf32>, vector<1x8x8xf32> -> vector<4x8x8xf32>
    %77 = arith.truncf %76 : vector<4x8x8xf32> to vector<4x8x8xbf16>
    %78 = vector.extract_strided_slice %57 {offsets = [0, 0], sizes = [8, 8], strides = [1, 1]} : vector<8x32xf32> to vector<8x8xf32>
    %79 = vector.extract_strided_slice %57 {offsets = [0, 8], sizes = [8, 8], strides = [1, 1]} : vector<8x32xf32> to vector<8x8xf32>
    %80 = vector.extract_strided_slice %57 {offsets = [0, 16], sizes = [8, 8], strides = [1, 1]} : vector<8x32xf32> to vector<8x8xf32>
    %81 = vector.extract_strided_slice %57 {offsets = [0, 24], sizes = [8, 8], strides = [1, 1]} : vector<8x32xf32> to vector<8x8xf32>
    %82 = vector.shape_cast %78 : vector<8x8xf32> to vector<1x8x8xf32>
    %83 = vector.shape_cast %79 : vector<8x8xf32> to vector<1x8x8xf32>
    %84 = vector.shape_cast %80 : vector<8x8xf32> to vector<1x8x8xf32>
    %85 = vector.shape_cast %81 : vector<8x8xf32> to vector<1x8x8xf32>
    %86 = tpu.concatenate %82, %83, %84, %85 in 0 : vector<1x8x8xf32>, vector<1x8x8xf32>, vector<1x8x8xf32>, vector<1x8x8xf32> -> vector<4x8x8xf32>
    %87 = arith.truncf %86 : vector<4x8x8xf32> to vector<4x8x8xbf16>
    "tpu.trace_start"() <{level = 10 : i32, message = "bqd,bkd->bqk"}> : () -> ()
    %cst_29 = arith.constant dense<0.000000e+00> : vector<4x8x8xf32>
    %88 = tpu.matmul %67, %77, %cst_29 {dimension_numbers = #tpu.dot_dimension_numbers<[2], [2], [1], [1], [0, 0, 0, 1, 1, 1], [0], [0]>} : vector<4x8x8xbf16>, vector<4x8x8xbf16>, vector<4x8x8xf32> -> vector<4x8x8xf32>
    "tpu.trace_stop"() : () -> ()
    %89 = vector.shape_cast %88 : vector<4x8x8xf32> to vector<1x4x8x8xf32>
    %c0_30 = arith.constant 0 : index
    %c0_31 = arith.constant 0 : index
    %c0_32 = arith.constant 0 : index
    %90 = vector.load %arg3[%c0_30, %c0_31, %c0_32] : memref<1x8x8xf32, #tpu.memory_space<vmem>>, vector<1x8x8xf32>
    %91 = vector.shape_cast %90 : vector<1x8x8xf32> to vector<1x1x8x8xf32>
    %92 = vector.broadcast %91 : vector<1x1x8x8xf32> to vector<1x4x8x8xf32>
    %93 = arith.addf %89, %92 : vector<1x4x8x8xf32>
    %cst_33 = arith.constant dense<0xFF800000> : vector<1x4x8xf32>
    %94 = vector.multi_reduction <maximumf>, %93, %cst_33 [3] : vector<1x4x8x8xf32> to vector<1x4x8xf32>
    %95 = vector.shape_cast %94 : vector<1x4x8xf32> to vector<1x4x8x1xf32>
    %96 = vector.broadcast %95 : vector<1x4x8x1xf32> to vector<1x4x8x8xf32>
    %97 = arith.subf %93, %96 : vector<1x4x8x8xf32>
    %98 = math.exp %97 : vector<1x4x8x8xf32>
    %cst_34 = arith.constant dense<0.000000e+00> : vector<1x4x8xf32>
    %99 = vector.multi_reduction <add>, %98, %cst_34 [3] : vector<1x4x8x8xf32> to vector<1x4x8xf32>
    %100 = vector.shape_cast %99 : vector<1x4x8xf32> to vector<1x4x8x1xf32>
    %101 = tpu.reciprocal %100 {approx = true} : vector<1x4x8x1xf32> -> vector<1x4x8x1xf32>
    %102 = vector.broadcast %101 : vector<1x4x8x1xf32> to vector<1x4x8x8xf32>
    %103 = arith.mulf %98, %102 : vector<1x4x8x8xf32>
    %104 = vector.shape_cast %103 : vector<1x4x8x8xf32> to vector<4x8x8xf32>
    %105 = arith.truncf %104 : vector<4x8x8xf32> to vector<4x8x8xbf16>
    "tpu.trace_start"() <{level = 10 : i32, message = "bqk,bkd->bqd"}> : () -> ()
    %cst_35 = arith.constant dense<0.000000e+00> : vector<4x8x8xf32>
    %106 = tpu.matmul %105, %87, %cst_35 {dimension_numbers = #tpu.dot_dimension_numbers<[2], [1], [1], [2], [0, 0, 0, 1, 1, 2], [0], [0]>} : vector<4x8x8xbf16>, vector<4x8x8xbf16>, vector<4x8x8xf32> -> vector<4x8x8xf32>
    "tpu.trace_stop"() : () -> ()
    %107 = vector.shape_cast %106 : vector<4x8x8xf32> to vector<1x4x8x8xf32>
    %c0_36 = arith.constant 0 : index
    %c0_37 = arith.constant 0 : index
    %108 = vector.load %arg11[%c0_36, %c0_37] : memref<32x32xbf16, #tpu.memory_space<vmem>>, vector<32x32xbf16>
    %c0_38 = arith.constant 0 : index
    %c0_39 = arith.constant 0 : index
    %109 = vector.load %arg12[%c0_38, %c0_39] : memref<1x32xf32, #tpu.memory_space<vmem>>, vector<1x32xf32>
    %110 = vector.extract_strided_slice %107 {offsets = [0, 0, 0, 0], sizes = [1, 1, 8, 8], strides = [1, 1, 1, 1]} : vector<1x4x8x8xf32> to vector<1x1x8x8xf32>
    %111 = vector.shape_cast %110 : vector<1x1x8x8xf32> to vector<1x8x8xf32>
    %112 = vector.shape_cast %111 : vector<1x8x8xf32> to vector<8x8xf32>
    %113 = arith.truncf %112 : vector<8x8xf32> to vector<8x8xbf16>
    %114 = vector.extract_strided_slice %108 {offsets = [0, 0], sizes = [8, 32], strides = [1, 1]} : vector<32x32xbf16> to vector<8x32xbf16>
    %cst_40 = arith.constant dense<0.000000e+00> : vector<8x32xf32>
    %115 = tpu.matmul %113, %114, %cst_40 {dimension_numbers = #tpu.dot_dimension_numbers<[1], [0], [0], [1], [0, 0, 1, 1], [], []>} : vector<8x8xbf16>, vector<8x32xbf16>, vector<8x32xf32> -> vector<8x32xf32>
    %116 = vector.broadcast %109 : vector<1x32xf32> to vector<8x32xf32>
    %117 = arith.addf %116, %115 : vector<8x32xf32>
    %118 = vector.extract_strided_slice %107 {offsets = [0, 1, 0, 0], sizes = [1, 1, 8, 8], strides = [1, 1, 1, 1]} : vector<1x4x8x8xf32> to vector<1x1x8x8xf32>
    %119 = vector.shape_cast %118 : vector<1x1x8x8xf32> to vector<1x8x8xf32>
    %120 = vector.shape_cast %119 : vector<1x8x8xf32> to vector<8x8xf32>
    %121 = arith.truncf %120 : vector<8x8xf32> to vector<8x8xbf16>
    %122 = vector.extract_strided_slice %108 {offsets = [8, 0], sizes = [8, 32], strides = [1, 1]} : vector<32x32xbf16> to vector<8x32xbf16>
    %cst_41 = arith.constant dense<0.000000e+00> : vector<8x32xf32>
    %123 = tpu.matmul %121, %122, %cst_41 {dimension_numbers = #tpu.dot_dimension_numbers<[1], [0], [0], [1], [0, 0, 1, 1], [], []>} : vector<8x8xbf16>, vector<8x32xbf16>, vector<8x32xf32> -> vector<8x32xf32>
    %124 = arith.addf %117, %123 : vector<8x32xf32>
    %125 = vector.extract_strided_slice %107 {offsets = [0, 2, 0, 0], sizes = [1, 1, 8, 8], strides = [1, 1, 1, 1]} : vector<1x4x8x8xf32> to vector<1x1x8x8xf32>
    %126 = vector.shape_cast %125 : vector<1x1x8x8xf32> to vector<1x8x8xf32>
    %127 = vector.shape_cast %126 : vector<1x8x8xf32> to vector<8x8xf32>
    %128 = arith.truncf %127 : vector<8x8xf32> to vector<8x8xbf16>
    %129 = vector.extract_strided_slice %108 {offsets = [16, 0], sizes = [8, 32], strides = [1, 1]} : vector<32x32xbf16> to vector<8x32xbf16>
    %cst_42 = arith.constant dense<0.000000e+00> : vector<8x32xf32>
    %130 = tpu.matmul %128, %129, %cst_42 {dimension_numbers = #tpu.dot_dimension_numbers<[1], [0], [0], [1], [0, 0, 1, 1], [], []>} : vector<8x8xbf16>, vector<8x32xbf16>, vector<8x32xf32> -> vector<8x32xf32>
    %131 = arith.addf %124, %130 : vector<8x32xf32>
    %132 = vector.extract_strided_slice %107 {offsets = [0, 3, 0, 0], sizes = [1, 1, 8, 8], strides = [1, 1, 1, 1]} : vector<1x4x8x8xf32> to vector<1x1x8x8xf32>
    %133 = vector.shape_cast %132 : vector<1x1x8x8xf32> to vector<1x8x8xf32>
    %134 = vector.shape_cast %133 : vector<1x8x8xf32> to vector<8x8xf32>
    %135 = arith.truncf %134 : vector<8x8xf32> to vector<8x8xbf16>
    %136 = vector.extract_strided_slice %108 {offsets = [24, 0], sizes = [8, 32], strides = [1, 1]} : vector<32x32xbf16> to vector<8x32xbf16>
    %cst_43 = arith.constant dense<0.000000e+00> : vector<8x32xf32>
    %137 = tpu.matmul %135, %136, %cst_43 {dimension_numbers = #tpu.dot_dimension_numbers<[1], [0], [0], [1], [0, 0, 1, 1], [], []>} : vector<8x8xbf16>, vector<8x32xbf16>, vector<8x32xf32> -> vector<8x32xf32>
    %138 = arith.addf %131, %137 : vector<8x32xf32>
    %139 = arith.addf %0, %138 : vector<8x32xf32>
    %c0_44 = arith.constant 0 : index
    %c0_45 = arith.constant 0 : index
    %140 = vector.load %arg13[%c0_44, %c0_45] : memref<1x32xf32, #tpu.memory_space<vmem>>, vector<1x32xf32>
    %c0_46 = arith.constant 0 : index
    %c0_47 = arith.constant 0 : index
    %141 = vector.load %arg14[%c0_46, %c0_47] : memref<1x32xf32, #tpu.memory_space<vmem>>, vector<1x32xf32>
    %cst_48 = arith.constant dense<0.000000e+00> : vector<8xf32>
    %142 = vector.multi_reduction <add>, %139, %cst_48 [1] : vector<8x32xf32> to vector<8xf32>
    %143 = vector.shape_cast %142 : vector<8xf32> to vector<8x1xf32>
    %cst_49 = arith.constant 3.200000e+01 : f32
    %144 = vector.broadcast %cst_49 : f32 to vector<8x1xf32>
    %145 = arith.divf %143, %144 : vector<8x1xf32>
    %146 = vector.broadcast %145 : vector<8x1xf32> to vector<8x32xf32>
    %147 = arith.subf %139, %146 : vector<8x32xf32>
    %148 = arith.mulf %147, %147 : vector<8x32xf32>
    %cst_50 = arith.constant dense<0.000000e+00> : vector<8xf32>
    %149 = vector.multi_reduction <add>, %148, %cst_50 [1] : vector<8x32xf32> to vector<8xf32>
    %150 = vector.shape_cast %149 : vector<8xf32> to vector<8x1xf32>
    %cst_51 = arith.constant 3.200000e+01 : f32
    %151 = vector.broadcast %cst_51 : f32 to vector<8x1xf32>
    %152 = arith.divf %150, %151 : vector<8x1xf32>
    %153 = vector.broadcast %145 : vector<8x1xf32> to vector<8x32xf32>
    %154 = arith.subf %139, %153 : vector<8x32xf32>
    %cst_52 = arith.constant 9.99999974E-6 : f32
    %155 = vector.broadcast %cst_52 : f32 to vector<8x1xf32>
    %156 = arith.addf %152, %155 : vector<8x1xf32>
    %157 = math.rsqrt %156 : vector<8x1xf32>
    %158 = vector.broadcast %157 : vector<8x1xf32> to vector<8x32xf32>
    %159 = arith.mulf %154, %158 : vector<8x32xf32>
    %160 = vector.broadcast %140 : vector<1x32xf32> to vector<8x32xf32>
    %161 = arith.mulf %159, %160 : vector<8x32xf32>
    %162 = vector.broadcast %141 : vector<1x32xf32> to vector<8x32xf32>
    %163 = arith.addf %161, %162 : vector<8x32xf32>
    %164 = arith.truncf %163 : vector<8x32xf32> to vector<8x32xbf16>
    %c0_53 = arith.constant 0 : index
    %c0_54 = arith.constant 0 : index
    %165 = vector.load %arg15[%c0_53, %c0_54] : memref<32x128xbf16, #tpu.memory_space<vmem>>, vector<32x128xbf16>
    %cst_55 = arith.constant dense<0.000000e+00> : vector<8x128xf32>
    %166 = tpu.matmul %164, %165, %cst_55 {dimension_numbers = #tpu.dot_dimension_numbers<[1], [0], [0], [1], [0, 0, 1, 1], [], []>} : vector<8x32xbf16>, vector<32x128xbf16>, vector<8x128xf32> -> vector<8x128xf32>
    %c0_56 = arith.constant 0 : index
    %c0_57 = arith.constant 0 : index
    %167 = vector.load %arg16[%c0_56, %c0_57] : memref<1x128xf32, #tpu.memory_space<vmem>>, vector<1x128xf32>
    %168 = vector.broadcast %167 : vector<1x128xf32> to vector<8x128xf32>
    %169 = arith.addf %166, %168 : vector<8x128xf32>
    %cst_58 = arith.constant 5.000000e-01 : f32
    %170 = vector.broadcast %cst_58 : f32 to vector<8x128xf32>
    %171 = arith.mulf %170, %169 : vector<8x128xf32>
    %cst_59 = arith.constant 0.707106769 : f32
    %172 = vector.broadcast %cst_59 : f32 to vector<8x128xf32>
    %173 = arith.mulf %169, %172 : vector<8x128xf32>
    %174 = math.erf %173 : vector<8x128xf32>
    %cst_60 = arith.constant 1.000000e+00 : f32
    %175 = vector.broadcast %cst_60 : f32 to vector<8x128xf32>
    %176 = arith.addf %175, %174 : vector<8x128xf32>
    %177 = arith.mulf %171, %176 : vector<8x128xf32>
    %178 = arith.truncf %177 : vector<8x128xf32> to vector<8x128xbf16>
    %c0_61 = arith.constant 0 : index
    %c0_62 = arith.constant 0 : index
    %179 = vector.load %arg17[%c0_61, %c0_62] : memref<128x32xbf16, #tpu.memory_space<vmem>>, vector<128x32xbf16>
    %cst_63 = arith.constant dense<0.000000e+00> : vector<8x32xf32>
    %180 = tpu.matmul %178, %179, %cst_63 {dimension_numbers = #tpu.dot_dimension_numbers<[1], [0], [0], [1], [0, 0, 1, 1], [], []>} : vector<8x128xbf16>, vector<128x32xbf16>, vector<8x32xf32> -> vector<8x32xf32>
    %c0_64 = arith.constant 0 : index
    %c0_65 = arith.constant 0 : index
    %181 = vector.load %arg18[%c0_64, %c0_65] : memref<1x32xf32, #tpu.memory_space<vmem>>, vector<1x32xf32>
    %182 = vector.broadcast %181 : vector<1x32xf32> to vector<8x32xf32>
    %183 = arith.addf %180, %182 : vector<8x32xf32>
    %184 = arith.addf %139, %183 : vector<8x32xf32>
    %c0_66 = arith.constant 0 : index
    %c0_67 = arith.constant 0 : index
    %185 = vector.load %arg19[%c0_66, %c0_67] : memref<8x32xf32, #tpu.memory_space<vmem>>, vector<8x32xf32>
    tpu.vector_store %arg19[%c0_66, %c0_67], %184 {strides = array<i32>} : memref<8x32xf32, #tpu.memory_space<vmem>>, vector<8x32xf32>,
    return
  }
  func.func @transform_0(%arg0: i32) -> (i32, i32) {
    %c0_i32 = arith.constant 0 : i32
    %c0_i32_0 = arith.constant 0 : i32
    return %arg0, %c0_i32 : i32, i32
  }
  func.func @transform_1(%arg0: i32) -> (i32, i32) {
    %c0_i32 = arith.constant 0 : i32
    %c0_i32_0 = arith.constant 0 : i32
    return %arg0, %c0_i32 : i32, i32
  }
  func.func @transform_2(%arg0: i32) -> (i32, i32, i32) {
    %c0_i32 = arith.constant 0 : i32
    %c0_i32_0 = arith.constant 0 : i32
    %c0_i32_1 = arith.constant 0 : i32
    return %arg0, %c0_i32, %c0_i32_0 : i32, i32, i32
  }
  func.func @transform_3(%arg0: i32) -> (i32, i32) {
    %c0_i32 = arith.constant 0 : i32
    %c0_i32_0 = arith.constant 0 : i32
    %c0_i32_1 = arith.constant 0 : i32
    return %c0_i32, %c0_i32_0 : i32, i32
  }
  func.func @transform_4(%arg0: i32) -> (i32, i32) {
    %c0_i32 = arith.constant 0 : i32
    %c0_i32_0 = arith.constant 0 : i32
    %c0_i32_1 = arith.constant 0 : i32
    return %c0_i32, %c0_i32_0 : i32, i32
  }
  func.func @transform_5(%arg0: i32) -> (i32, i32) {
    %c0_i32 = arith.constant 0 : i32
    %c0_i32_0 = arith.constant 0 : i32
    %c0_i32_1 = arith.constant 0 : i32
    return %c0_i32, %c0_i32_0 : i32, i32
  }
  func.func @transform_6(%arg0: i32) -> (i32, i32) {
    %c0_i32 = arith.constant 0 : i32
    %c0_i32_0 = arith.constant 0 : i32
    %c0_i32_1 = arith.constant 0 : i32
    return %c0_i32, %c0_i32_0 : i32, i32
  }
  func.func @transform_7(%arg0: i32) -> (i32, i32) {
    %c0_i32 = arith.constant 0 : i32
    %c0_i32_0 = arith.constant 0 : i32
    %c0_i32_1 = arith.constant 0 : i32
    return %c0_i32, %c0_i32_0 : i32, i32
  }
  func.func @transform_8(%arg0: i32) -> (i32, i32) {
    %c0_i32 = arith.constant 0 : i32
    %c0_i32_0 = arith.constant 0 : i32
    %c0_i32_1 = arith.constant 0 : i32
    return %c0_i32, %c0_i32_0 : i32, i32
  }
  func.func @transform_9(%arg0: i32) -> (i32, i32) {
    %c0_i32 = arith.constant 0 : i32
    %c0_i32_0 = arith.constant 0 : i32
    %c0_i32_1 = arith.constant 0 : i32
    return %c0_i32, %c0_i32_0 : i32, i32
  }
  func.func @transform_10(%arg0: i32) -> (i32, i32) {
    %c0_i32 = arith.constant 0 : i32
    %c0_i32_0 = arith.constant 0 : i32
    %c0_i32_1 = arith.constant 0 : i32
    return %c0_i32, %c0_i32_0 : i32, i32
  }
  func.func @transform_11(%arg0: i32) -> (i32, i32) {
    %c0_i32 = arith.constant 0 : i32
    %c0_i32_0 = arith.constant 0 : i32
    %c0_i32_1 = arith.constant 0 : i32
    return %c0_i32, %c0_i32_0 : i32, i32
  }
  func.func @transform_12(%arg0: i32) -> (i32, i32) {
    %c0_i32 = arith.constant 0 : i32
    %c0_i32_0 = arith.constant 0 : i32
    %c0_i32_1 = arith.constant 0 : i32
    return %c0_i32, %c0_i32_0 : i32, i32
  }
  func.func @transform_13(%arg0: i32) -> (i32, i32) {
    %c0_i32 = arith.constant 0 : i32
    %c0_i32_0 = arith.constant 0 : i32
    %c0_i32_1 = arith.constant 0 : i32
    return %c0_i32, %c0_i32_0 : i32, i32
  }
  func.func @transform_14(%arg0: i32) -> (i32, i32) {
    %c0_i32 = arith.constant 0 : i32
    %c0_i32_0 = arith.constant 0 : i32
    %c0_i32_1 = arith.constant 0 : i32
    return %c0_i32, %c0_i32_0 : i32, i32
  }
  func.func @transform_15(%arg0: i32) -> (i32, i32) {
    %c0_i32 = arith.constant 0 : i32
    %c0_i32_0 = arith.constant 0 : i32
    %c0_i32_1 = arith.constant 0 : i32
    return %c0_i32, %c0_i32_0 : i32, i32
  }
  func.func @transform_16(%arg0: i32) -> (i32, i32) {
    %c0_i32 = arith.constant 0 : i32
    %c0_i32_0 = arith.constant 0 : i32
    %c0_i32_1 = arith.constant 0 : i32
    return %c0_i32, %c0_i32_0 : i32, i32
  }
  func.func @transform_17(%arg0: i32) -> (i32, i32) {
    %c0_i32 = arith.constant 0 : i32
    %c0_i32_0 = arith.constant 0 : i32
    %c0_i32_1 = arith.constant 0 : i32
    return %c0_i32, %c0_i32_0 : i32, i32
  }
  func.func @transform_18(%arg0: i32) -> (i32, i32) {
    %c0_i32 = arith.constant 0 : i32
    %c0_i32_0 = arith.constant 0 : i32
    return %arg0, %c0_i32 : i32, i32
  }
}

</mosaic_0001>

<llo_original>
// kernel: tpu_custom_call.1
$region0: #{tpu_custom_call.1}
  #allocation0 [shape = 'u32[]', space=smem, size = 0x4, offset = 0x4, fixed_abs, tag = 'smem constant byte address 0x4 - core index']
  #allocation1 [shape = 'u32[144,128]{1,0:T(1,128)}', space=vmem, size = 0x12000, scoped, tag = 'internal scratch']
  %s0 = inlined_call_operand.vmem [shape: f32[16,32], index: 0, kind: input, shape index: {}]
  %s1 = inlined_call_operand.vmem [shape: f32[16,32], index: 1, kind: input, shape index: {}]
  %s2 = inlined_call_operand.vmem [shape: f32[2,8,8], index: 2, kind: input, shape index: {}]
  %s3 = inlined_call_operand.vmem [shape: f32[1,32], index: 3, kind: input, shape index: {}]
  %s4 = inlined_call_operand.hbm [shape: f32[1,32], index: 4, kind: input, shape index: {}]
  %s5 = inlined_call_operand.hbm [shape: f32[1,32], index: 5, kind: input, shape index: {}]
  %s6 = inlined_call_operand.hbm [shape: f32[1,32], index: 6, kind: input, shape index: {}]
  %s7 = inlined_call_operand.vmem [shape: bf16[32,32], index: 7, kind: input, shape index: {}]
  %s8 = inlined_call_operand.vmem [shape: bf16[32,32], index: 8, kind: input, shape index: {}]
  %s9 = inlined_call_operand.vmem [shape: bf16[32,32], index: 9, kind: input, shape index: {}]
  %s10 = inlined_call_operand.hbm [shape: bf16[32,32], index: 10, kind: input, shape index: {}]
  %s11 = inlined_call_operand.hbm [shape: f32[1,32], index: 11, kind: input, shape index: {}]
  %s12 = inlined_call_operand.hbm [shape: f32[1,32], index: 12, kind: input, shape index: {}]
  %s13 = inlined_call_operand.hbm [shape: f32[1,32], index: 13, kind: input, shape index: {}]
  %s14 = inlined_call_operand.vmem [shape: bf16[32,128], index: 14, kind: input, shape index: {}]
  %s15 = inlined_call_operand.vmem [shape: f32[1,128], index: 15, kind: input, shape index: {}]
  %s16 = inlined_call_operand.vmem [shape: bf16[128,32], index: 16, kind: input, shape index: {}]
  %s17 = inlined_call_operand.vmem [shape: f32[1,32], index: 17, kind: input, shape index: {}]
  %s18 = inlined_call_operand.hbm [shape: f32[16,32], index: 18, kind: output, shape index: {}]
  %s19 = sld [smem:[#allocation0]]
  $region133: #{tpu_custom_call.1} parent=0
    _
  %s21 = ssub.s32 1, %s19
  %s22 = scalar_select 0, %s21, %s19
  $region1: #{tpu_custom_call.1} parent=0
    #allocation2 [shape = 'u8[512]{0}', space=vmem, size = 0x400, scoped, tag = 'input window, operand 4, single buffered']
    #allocation3 [shape = 's32[2]{0}', space=sflag, size = 0x8, scoped, tag = 'scoped memory for tpu_custom_call.1']
    #allocation4 [shape = 's32[2]{0}', space=sflag, size = 0x8, scoped, tag = 'scoped memory for tpu_custom_call.1']
    #allocation5 [shape = 'u8[512]{0}', space=vmem, size = 0x400, scoped, tag = 'input window, operand 5, single buffered']
    #allocation6 [shape = 's32[1]{0}', space=sflag, size = 0x4, scoped, tag = 'scoped memory for tpu_custom_call.1']
    #allocation7 [shape = 'u8[512]{0}', space=vmem, size = 0x400, scoped, tag = 'input window, operand 6, single buffered']
    #allocation8 [shape = 'u8[8192]{0}', space=vmem, size = 0x2000, scoped, tag = 'input window, operand 10, single buffered']
    #allocation9 [shape = 's32[1]{0}', space=sflag, size = 0x4, scoped, tag = 'scoped memory for tpu_custom_call.1']
    #allocation10 [shape = 'u8[512]{0}', space=vmem, size = 0x400, scoped, tag = 'input window, operand 11, single buffered']
    #allocation11 [shape = 'u8[512]{0}', space=vmem, size = 0x400, scoped, tag = 'input window, operand 12, single buffered']
    #allocation12 [shape = 's32[1]{0}', space=sflag, size = 0x4, scoped, tag = 'scoped memory for tpu_custom_call.1']
    #allocation13 [shape = 'u8[512]{0}', space=vmem, size = 0x400, scoped, tag = 'input window, operand 13, single buffered']
    #allocation14 [shape = 'u8[8192]{0}', space=vmem, size = 0x2000, scoped, tag = 'output window, operand 0']
    %23 = vsyncpa [#allocation3], 0
    %24 = vsyncpa [#allocation6], 0
    %25 = vsyncpa [#allocation9], 0
    %26 = vsyncpa [#allocation12], 0
    %27 = vsyncpa [#allocation4], 0
    %s28 = scalar_lea.sflag [#allocation4], 1
    %29 = vsyncpa %s28, 0
    loop: start=0, step=1, limit=4
    $region2: #{tpu_custom_call.1} parent=1 // loop_pre_header
      _
    $region3: #{tpu_custom_call.1} parent=1 // loop_header
      %s31 = sphi 0, %s35
      %p32 = scmp.ge.s32.totalorder %s31, 4
      %s41 = sphi 0, %s43
      %s44 = sphi 0, %s41
      %s45 = sphi 0, %s44
      %s61 = sphi 0, %s45
      %s67 = sphi 0, %s69
      %s70 = sphi 0, %s67
      %s71 = sphi 0, %s70
      %s87 = sphi 0, %s71
      %s93 = sphi 0, %s95
      %s96 = sphi 0, %s93
      %s97 = sphi 0, %s96
      %s113 = sphi 0, %s97
      %s117 = sphi 0, %s117
      %s119 = sphi 0, %s117
      %s120 = sphi 0, %s119
      %s134 = sphi 0, %s120
      %s138 = sphi 0, %s138
      %s140 = sphi 0, %s138
      %s141 = sphi 0, %s140
      %s155 = sphi 0, %s141
      %s159 = sphi 0, %s159
      %s161 = sphi 0, %s159
      %s162 = sphi 0, %s161
      %s176 = sphi 0, %s162
      %s180 = sphi 0, %s180
      %s182 = sphi 0, %s180
      %s183 = sphi 0, %s182
      %s197 = sphi 0, %s183
      %s201 = sphi 0, %s201
      %s203 = sphi 0, %s201
      %s204 = sphi 0, %s203
      %s218 = sphi 0, %s204
      %s222 = sphi 0, %s222
      %s224 = sphi 0, %s222
      %s225 = sphi 0, %s224
      %s239 = sphi 0, %s225
      %s243 = sphi 0, %s243
      %s245 = sphi 0, %s243
      %s246 = sphi 0, %s245
      %s260 = sphi 0, %s246
      %s264 = sphi 0, %s264
      %s266 = sphi 0, %s264
      %s267 = sphi 0, %s266
      %s281 = sphi 0, %s267
      %s285 = sphi 0, %s285
      %s287 = sphi 0, %s285
      %s288 = sphi 0, %s287
      %s302 = sphi 0, %s288
      %s306 = sphi 0, %s306
      %s308 = sphi 0, %s306
      %s309 = sphi 0, %s308
      %s323 = sphi 0, %s309
      %s327 = sphi 0, %s327
      %s329 = sphi 0, %s327
      %s330 = sphi 0, %s329
      %s344 = sphi 0, %s330
      %s348 = sphi 0, %s348
      %s350 = sphi 0, %s348
      %s351 = sphi 0, %s350
      %s365 = sphi 0, %s351
      %s369 = sphi 0, %s369
      %s371 = sphi 0, %s369
      %s372 = sphi 0, %s371
      %s386 = sphi 0, %s372
      %s390 = sphi 0, %s390
      %s392 = sphi 0, %s390
      %s393 = sphi 0, %s392
      %s407 = sphi 0, %s393
      %s411 = sphi 0, %s411
      %s413 = sphi 0, %s411
      %s414 = sphi 0, %s413
      %s428 = sphi 0, %s414
      %s434 = sphi 0, %s436
      %s437 = sphi 0, %s434
      %s438 = sphi 0, %s437
      %s454 = sphi 0, %s438
    $region4: #{tpu_custom_call.1} parent=1 // loop_header_branch
      %34 = sbr.rel (%p32) target = $region8
    $region5: #{tpu_custom_call.1} parent=1 // loop_body
      %s36 = ssub.s32 %s31, 1
      %s37 = ssub.s32 %s31, 2
      %s38 = sadd.s32 %s31, 1
      %s39 = ssub.s32 %s31, %s38
      %p40 = scmp.eq.s32.totalorder %s39, 0
      %s42 = sadd.s32 %s41, 1
      %s43 = scalar_select %p40, %s41, %s42
      %p46 = pneg %p40
      %p47 = scmp.eq.s32.totalorder %s31, 1
      %p48 = por %p46, %p47
      %p49 = scmp.ne.s32.totalorder %s41, %s44
      %p50 = scmp.eq.s32.totalorder %s31, 0
      %p51 = por %p49, %p50
      %p52 = scmp.ne.s32.totalorder %s41, %s44
      %p53 = scmp.eq.s32.totalorder %s36, 1
      %p54 = por %p52, %p53
      %p55 = scmp.ne.s32.totalorder %s44, %s45
      %p56 = scmp.eq.s32.totalorder %s36, 0
      %p57 = por %p55, %p56
      %p58 = scmp.ne.s32.totalorder %s44, %s45
      %p59 = scmp.eq.s32.totalorder %s37, 1
      %p60 = por %p58, %p59
      %p62 = scmp.ne.s32.totalorder %s45, %s61
      %p63 = scmp.eq.s32.totalorder %s37, 0
      %p64 = por %p62, %p63
      %s65 = ssub.s32 %s31, %s38
      %p66 = scmp.eq.s32.totalorder %s65, 0
      %s68 = sadd.s32 %s67, 1
      %s69 = scalar_select %p66, %s67, %s68
      %p72 = pneg %p66
      %p73 = scmp.eq.s32.totalorder %s31, 1
      %p74 = por %p72, %p73
      %p75 = scmp.ne.s32.totalorder %s67, %s70
      %p76 = scmp.eq.s32.totalorder %s31, 0
      %p77 = por %p75, %p76
      %p78 = scmp.ne.s32.totalorder %s67, %s70
      %p79 = scmp.eq.s32.totalorder %s36, 1
      %p80 = por %p78, %p79
      %p81 = scmp.ne.s32.totalorder %s70, %s71
      %p82 = scmp.eq.s32.totalorder %s36, 0
      %p83 = por %p81, %p82
      %p84 = scmp.ne.s32.totalorder %s70, %s71
      %p85 = scmp.eq.s32.totalorder %s37, 1
      %p86 = por %p84, %p85
      %p88 = scmp.ne.s32.totalorder %s71, %s87
      %p89 = scmp.eq.s32.totalorder %s37, 0
      %p90 = por %p88, %p89
      %s91 = ssub.s32 %s31, %s38
      %p92 = scmp.eq.s32.totalorder %s91, 0
      %s94 = sadd.s32 %s93, 1
      %s95 = scalar_select %p92, %s93, %s94
      %p98 = pneg %p92
      %p99 = scmp.eq.s32.totalorder %s31, 1
      %p100 = por %p98, %p99
      %p101 = scmp.ne.s32.totalorder %s93, %s96
      %p102 = scmp.eq.s32.totalorder %s31, 0
      %p103 = por %p101, %p102
      %p104 = scmp.ne.s32.totalorder %s93, %s96
      %p105 = scmp.eq.s32.totalorder %s36, 1
      %p106 = por %p104, %p105
      %p107 = scmp.ne.s32.totalorder %s96, %s97
      %p108 = scmp.eq.s32.totalorder %s36, 0
      %p109 = por %p107, %p108
      %p110 = scmp.ne.s32.totalorder %s96, %s97
      %p111 = scmp.eq.s32.totalorder %s37, 1
      %p112 = por %p110, %p111
      %p114 = scmp.ne.s32.totalorder %s97, %s113
      %p115 = scmp.eq.s32.totalorder %s37, 0
      %p116 = por %p114, %p115
      %s118 = sadd.s32 %s117, 1
      %p121 = scmp.eq.s32.totalorder %s31, 1
      %p122 = scmp.ne.s32.totalorder %s117, %s119
      %p123 = scmp.eq.s32.totalorder %s31, 0
      %p124 = por %p122, %p123
      %p125 = scmp.ne.s32.totalorder %s117, %s119
      %p126 = scmp.eq.s32.totalorder %s36, 1
      %p127 = por %p125, %p126
      %p128 = scmp.ne.s32.totalorder %s119, %s120
      %p129 = scmp.eq.s32.totalorder %s36, 0
      %p130 = por %p128, %p129
      %p131 = scmp.ne.s32.totalorder %s119, %s120
      %p132 = scmp.eq.s32.totalorder %s37, 1
      %p133 = por %p131, %p132
      %p135 = scmp.ne.s32.totalorder %s120, %s134
      %p136 = scmp.eq.s32.totalorder %s37, 0
      %p137 = por %p135, %p136
      %s139 = sadd.s32 %s138, 1
      %p142 = scmp.eq.s32.totalorder %s31, 1
      %p143 = scmp.ne.s32.totalorder %s138, %s140
      %p144 = scmp.eq.s32.totalorder %s31, 0
      %p145 = por %p143, %p144
      %p146 = scmp.ne.s32.totalorder %s138, %s140
      %p147 = scmp.eq.s32.totalorder %s36, 1
      %p148 = por %p146, %p147
      %p149 = scmp.ne.s32.totalorder %s140, %s141
      %p150 = scmp.eq.s32.totalorder %s36, 0
      %p151 = por %p149, %p150
      %p152 = scmp.ne.s32.totalorder %s140, %s141
      %p153 = scmp.eq.s32.totalorder %s37, 1
      %p154 = por %p152, %p153
      %p156 = scmp.ne.s32.totalorder %s141, %s155
      %p157 = scmp.eq.s32.totalorder %s37, 0
      %p158 = por %p156, %p157
      %s160 = sadd.s32 %s159, 1
      %p163 = scmp.eq.s32.totalorder %s31, 1
      %p164 = scmp.ne.s32.totalorder %s159, %s161
      %p165 = scmp.eq.s32.totalorder %s31, 0
      %p166 = por %p164, %p165
      %p167 = scmp.ne.s32.totalorder %s159, %s161
      %p168 = scmp.eq.s32.totalorder %s36, 1
      %p169 = por %p167, %p168
      %p170 = scmp.ne.s32.totalorder %s161, %s162
      %p171 = scmp.eq.s32.totalorder %s36, 0
      %p172 = por %p170, %p171
      %p173 = scmp.ne.s32.totalorder %s161, %s162
      %p174 = scmp.eq.s32.totalorder %s37, 1
      %p175 = por %p173, %p174
      %p177 = scmp.ne.s32.totalorder %s162, %s176
      %p178 = scmp.eq.s32.totalorder %s37, 0
      %p179 = por %p177, %p178
      %s181 = sadd.s32 %s180, 1
      %p184 = scmp.eq.s32.totalorder %s31, 1
      %p185 = scmp.ne.s32.totalorder %s180, %s182
      %p186 = scmp.eq.s32.totalorder %s31, 0
      %p187 = por %p185, %p186
      %p188 = scmp.ne.s32.totalorder %s180, %s182
      %p189 = scmp.eq.s32.totalorder %s36, 1
      %p190 = por %p188, %p189
      %p191 = scmp.ne.s32.totalorder %s182, %s183
      %p192 = scmp.eq.s32.totalorder %s36, 0
      %p193 = por %p191, %p192
      %p194 = scmp.ne.s32.totalorder %s182, %s183
      %p195 = scmp.eq.s32.totalorder %s37, 1
      %p196 = por %p194, %p195
      %p198 = scmp.ne.s32.totalorder %s183, %s197
      %p199 = scmp.eq.s32.totalorder %s37, 0
      %p200 = por %p198, %p199
      %s202 = sadd.s32 %s201, 1
      %p205 = scmp.eq.s32.totalorder %s31, 1
      %p206 = scmp.ne.s32.totalorder %s201, %s203
      %p207 = scmp.eq.s32.totalorder %s31, 0
      %p208 = por %p206, %p207
      %p209 = scmp.ne.s32.totalorder %s201, %s203
      %p210 = scmp.eq.s32.totalorder %s36, 1
      %p211 = por %p209, %p210
      %p212 = scmp.ne.s32.totalorder %s203, %s204
      %p213 = scmp.eq.s32.totalorder %s36, 0
      %p214 = por %p212, %p213
      %p215 = scmp.ne.s32.totalorder %s203, %s204
      %p216 = scmp.eq.s32.totalorder %s37, 1
      %p217 = por %p215, %p216
      %p219 = scmp.ne.s32.totalorder %s204, %s218
      %p220 = scmp.eq.s32.totalorder %s37, 0
      %p221 = por %p219, %p220
      %s223 = sadd.s32 %s222, 1
      %p226 = scmp.eq.s32.totalorder %s31, 1
      %p227 = scmp.ne.s32.totalorder %s222, %s224
      %p228 = scmp.eq.s32.totalorder %s31, 0
      %p229 = por %p227, %p228
      %p230 = scmp.ne.s32.totalorder %s222, %s224
      %p231 = scmp.eq.s32.totalorder %s36, 1
      %p232 = por %p230, %p231
      %p233 = scmp.ne.s32.totalorder %s224, %s225
      %p234 = scmp.eq.s32.totalorder %s36, 0
      %p235 = por %p233, %p234
      %p236 = scmp.ne.s32.totalorder %s224, %s225
      %p237 = scmp.eq.s32.totalorder %s37, 1
      %p238 = por %p236, %p237
      %p240 = scmp.ne.s32.totalorder %s225, %s239
      %p241 = scmp.eq.s32.totalorder %s37, 0
      %p242 = por %p240, %p241
      %s244 = sadd.s32 %s243, 1
      %p247 = scmp.eq.s32.totalorder %s31, 1
      %p248 = scmp.ne.s32.totalorder %s243, %s245
      %p249 = scmp.eq.s32.totalorder %s31, 0
      %p250 = por %p248, %p249
      %p251 = scmp.ne.s32.totalorder %s243, %s245
      %p252 = scmp.eq.s32.totalorder %s36, 1
      %p253 = por %p251, %p252
      %p254 = scmp.ne.s32.totalorder %s245, %s246
      %p255 = scmp.eq.s32.totalorder %s36, 0
      %p256 = por %p254, %p255
      %p257 = scmp.ne.s32.totalorder %s245, %s246
      %p258 = scmp.eq.s32.totalorder %s37, 1
      %p259 = por %p257, %p258
      %p261 = scmp.ne.s32.totalorder %s246, %s260
      %p262 = scmp.eq.s32.totalorder %s37, 0
      %p263 = por %p261, %p262
      %s265 = sadd.s32 %s264, 1
      %p268 = scmp.eq.s32.totalorder %s31, 1
      %p269 = scmp.ne.s32.totalorder %s264, %s266
      %p270 = scmp.eq.s32.totalorder %s31, 0
      %p271 = por %p269, %p270
      %p272 = scmp.ne.s32.totalorder %s264, %s266
      %p273 = scmp.eq.s32.totalorder %s36, 1
      %p274 = por %p272, %p273
      %p275 = scmp.ne.s32.totalorder %s266, %s267
      %p276 = scmp.eq.s32.totalorder %s36, 0
      %p277 = por %p275, %p276
      %p278 = scmp.ne.s32.totalorder %s266, %s267
      %p279 = scmp.eq.s32.totalorder %s37, 1
      %p280 = por %p278, %p279
      %p282 = scmp.ne.s32.totalorder %s267, %s281
      %p283 = scmp.eq.s32.totalorder %s37, 0
      %p284 = por %p282, %p283
      %s286 = sadd.s32 %s285, 1
      %p289 = scmp.eq.s32.totalorder %s31, 1
      %p290 = scmp.ne.s32.totalorder %s285, %s287
      %p291 = scmp.eq.s32.totalorder %s31, 0
      %p292 = por %p290, %p291
      %p293 = scmp.ne.s32.totalorder %s285, %s287
      %p294 = scmp.eq.s32.totalorder %s36, 1
      %p295 = por %p293, %p294
      %p296 = scmp.ne.s32.totalorder %s287, %s288
      %p297 = scmp.eq.s32.totalorder %s36, 0
      %p298 = por %p296, %p297
      %p299 = scmp.ne.s32.totalorder %s287, %s288
      %p300 = scmp.eq.s32.totalorder %s37, 1
      %p301 = por %p299, %p300
      %p303 = scmp.ne.s32.totalorder %s288, %s302
      %p304 = scmp.eq.s32.totalorder %s37, 0
      %p305 = por %p303, %p304
      %s307 = sadd.s32 %s306, 1
      %p310 = scmp.eq.s32.totalorder %s31, 1
      %p311 = scmp.ne.s32.totalorder %s306, %s308
      %p312 = scmp.eq.s32.totalorder %s31, 0
      %p313 = por %p311, %p312
      %p314 = scmp.ne.s32.totalorder %s306, %s308
      %p315 = scmp.eq.s32.totalorder %s36, 1
      %p316 = por %p314, %p315
      %p317 = scmp.ne.s32.totalorder %s308, %s309
      %p318 = scmp.eq.s32.totalorder %s36, 0
      %p319 = por %p317, %p318
      %p320 = scmp.ne.s32.totalorder %s308, %s309
      %p321 = scmp.eq.s32.totalorder %s37, 1
      %p322 = por %p320, %p321
      %p324 = scmp.ne.s32.totalorder %s309, %s323
      %p325 = scmp.eq.s32.totalorder %s37, 0
      %p326 = por %p324, %p325
      %s328 = sadd.s32 %s327, 1
      %p331 = scmp.eq.s32.totalorder %s31, 1
      %p332 = scmp.ne.s32.totalorder %s327, %s329
      %p333 = scmp.eq.s32.totalorder %s31, 0
      %p334 = por %p332, %p333
      %p335 = scmp.ne.s32.totalorder %s327, %s329
      %p336 = scmp.eq.s32.totalorder %s36, 1
      %p337 = por %p335, %p336
      %p338 = scmp.ne.s32.totalorder %s329, %s330
      %p339 = scmp.eq.s32.totalorder %s36, 0
      %p340 = por %p338, %p339
      %p341 = scmp.ne.s32.totalorder %s329, %s330
      %p342 = scmp.eq.s32.totalorder %s37, 1
      %p343 = por %p341, %p342
      %p345 = scmp.ne.s32.totalorder %s330, %s344
      %p346 = scmp.eq.s32.totalorder %s37, 0
      %p347 = por %p345, %p346
      %s349 = sadd.s32 %s348, 1
      %p352 = scmp.eq.s32.totalorder %s31, 1
      %p353 = scmp.ne.s32.totalorder %s348, %s350
      %p354 = scmp.eq.s32.totalorder %s31, 0
      %p355 = por %p353, %p354
      %p356 = scmp.ne.s32.totalorder %s348, %s350
      %p357 = scmp.eq.s32.totalorder %s36, 1
      %p358 = por %p356, %p357
      %p359 = scmp.ne.s32.totalorder %s350, %s351
      %p360 = scmp.eq.s32.totalorder %s36, 0
      %p361 = por %p359, %p360
      %p362 = scmp.ne.s32.totalorder %s350, %s351
      %p363 = scmp.eq.s32.totalorder %s37, 1
      %p364 = por %p362, %p363
      %p366 = scmp.ne.s32.totalorder %s351, %s365
      %p367 = scmp.eq.s32.totalorder %s37, 0
      %p368 = por %p366, %p367
      %s370 = sadd.s32 %s369, 1
      %p373 = scmp.eq.s32.totalorder %s31, 1
      %p374 = scmp.ne.s32.totalorder %s369, %s371
      %p375 = scmp.eq.s32.totalorder %s31, 0
      %p376 = por %p374, %p375
      %p377 = scmp.ne.s32.totalorder %s369, %s371
      %p378 = scmp.eq.s32.totalorder %s36, 1
      %p379 = por %p377, %p378
      %p380 = scmp.ne.s32.totalorder %s371, %s372
      %p381 = scmp.eq.s32.totalorder %s36, 0
      %p382 = por %p380, %p381
      %p383 = scmp.ne.s32.totalorder %s371, %s372
      %p384 = scmp.eq.s32.totalorder %s37, 1
      %p385 = por %p383, %p384
      %p387 = scmp.ne.s32.totalorder %s372, %s386
      %p388 = scmp.eq.s32.totalorder %s37, 0
      %p389 = por %p387, %p388
      %s391 = sadd.s32 %s390, 1
      %p394 = scmp.eq.s32.totalorder %s31, 1
      %p395 = scmp.ne.s32.totalorder %s390, %s392
      %p396 = scmp.eq.s32.totalorder %s31, 0
      %p397 = por %p395, %p396
      %p398 = scmp.ne.s32.totalorder %s390, %s392
      %p399 = scmp.eq.s32.totalorder %s36, 1
      %p400 = por %p398, %p399
      %p401 = scmp.ne.s32.totalorder %s392, %s393
      %p402 = scmp.eq.s32.totalorder %s36, 0
      %p403 = por %p401, %p402
      %p404 = scmp.ne.s32.totalorder %s392, %s393
      %p405 = scmp.eq.s32.totalorder %s37, 1
      %p406 = por %p404, %p405
      %p408 = scmp.ne.s32.totalorder %s393, %s407
      %p409 = scmp.eq.s32.totalorder %s37, 0
      %p410 = por %p408, %p409
      %s412 = sadd.s32 %s411, 1
      %p415 = scmp.eq.s32.totalorder %s31, 1
      %p416 = scmp.ne.s32.totalorder %s411, %s413
      %p417 = scmp.eq.s32.totalorder %s31, 0
      %p418 = por %p416, %p417
      %p419 = scmp.ne.s32.totalorder %s411, %s413
      %p420 = scmp.eq.s32.totalorder %s36, 1
      %p421 = por %p419, %p420
      %p422 = scmp.ne.s32.totalorder %s413, %s414
      %p423 = scmp.eq.s32.totalorder %s36, 0
      %p424 = por %p422, %p423
      %p425 = scmp.ne.s32.totalorder %s413, %s414
      %p426 = scmp.eq.s32.totalorder %s37, 1
      %p427 = por %p425, %p426
      %p429 = scmp.ne.s32.totalorder %s414, %s428
      %p430 = scmp.eq.s32.totalorder %s37, 0
      %p431 = por %p429, %p430
      %s432 = ssub.s32 %s31, %s38
      %p433 = scmp.eq.s32.totalorder %s432, 0
      %s435 = sadd.s32 %s434, 1
      %s436 = scalar_select %p433, %s434, %s435
      %p439 = pneg %p433
      %p440 = scmp.eq.s32.totalorder %s31, 1
      %p441 = por %p439, %p440
      %p442 = scmp.ne.s32.totalorder %s434, %s437
      %p443 = scmp.eq.s32.totalorder %s31, 0
      %p444 = por %p442, %p443
      %p445 = scmp.ne.s32.totalorder %s434, %s437
      %p446 = scmp.eq.s32.totalorder %s36, 1
      %p447 = por %p445, %p446
      %p448 = scmp.ne.s32.totalorder %s437, %s438
      %p449 = scmp.eq.s32.totalorder %s36, 0
      %p450 = por %p448, %p449
      %p451 = scmp.ne.s32.totalorder %s437, %s438
      %p452 = scmp.eq.s32.totalorder %s37, 1
      %p453 = por %p451, %p452
      %p455 = scmp.ne.s32.totalorder %s438, %s454
      %p456 = scmp.eq.s32.totalorder %s37, 0
      %p457 = por %p455, %p456
      %p458 = scmp.le.s32.totalorder 1, %s31
      %p459 = scmp.lt.s32.totalorder %s31, 3
      %p460 = pnand %p458, %p459
      %p461 = pneg %p460
      // Predicated region
      $region9: #{tpu_custom_call.1} parent=5 // pred_check
        _
      $region10: #{tpu_custom_call.1} parent=5 // pred_check_branch
        %463 = sbr.rel (%p460) target = $region12
      $region11: #{tpu_custom_call.1} parent=5 // pred_region
        %s464 = ssub.s32 %s31, 1
        // Predicated region
        $region13: #{tpu_custom_call.1} parent=11 // pred_check
          %p465 = pneg %p130
        $region14: #{tpu_custom_call.1} parent=11 // pred_check_branch
          %467 = sbr.rel (%p465) target = $region16
        $region15: #{tpu_custom_call.1} parent=11 // pred_region
          _
        $region16: #{tpu_custom_call.1} parent=11 // pred_fallthru
          _
        // Predicated region
        $region17: #{tpu_custom_call.1} parent=11 // pred_check
          %p468 = pneg %p151
        $region18: #{tpu_custom_call.1} parent=11 // pred_check_branch
          %470 = sbr.rel (%p468) target = $region20
        $region19: #{tpu_custom_call.1} parent=11 // pred_region
          %s472 = ssub.s32 16, 16
          %473 = vsyncadd [#allocation3], %s472
          %s475 = sshll.u32 [#allocation2], 4
          %s476 = int_to_ptr.vmem [resolvable:$true] %s475
          %478 = dma.hbm_to_vmem [thread:$0]  %s4, 16, %s476, [#allocation3]
        $region20: #{tpu_custom_call.1} parent=11 // pred_fallthru
          _
        // Predicated region
        $region21: #{tpu_custom_call.1} parent=11 // pred_check
          %p479 = pneg %p172
        $region22: #{tpu_custom_call.1} parent=11 // pred_check_branch
          %481 = sbr.rel (%p479) target = $region24
        $region23: #{tpu_custom_call.1} parent=11 // pred_region
          %s483 = ssub.s32 16, 16
          %484 = vsyncadd [#allocation6], %s483
          %s486 = sshll.u32 [#allocation5], 4
          %s487 = int_to_ptr.vmem [resolvable:$true] %s486
          %489 = dma.hbm_to_vmem [thread:$0]  %s5, 16, %s487, [#allocation6]
        $region24: #{tpu_custom_call.1} parent=11 // pred_fallthru
          _
        // Predicated region
        $region25: #{tpu_custom_call.1} parent=11 // pred_check
          %p490 = pneg %p193
        $region26: #{tpu_custom_call.1} parent=11 // pred_check_branch
          %492 = sbr.rel (%p490) target = $region28
        $region27: #{tpu_custom_call.1} parent=11 // pred_region
          %s494 = ssub.s32 16, 16
          %495 = vsyncadd [#allocation6], %s494
          %s497 = sshll.u32 [#allocation7], 4
          %s498 = int_to_ptr.vmem [resolvable:$true] %s497
          %500 = dma.hbm_to_vmem [thread:$0]  %s6, 16, %s498, [#allocation6]
        $region28: #{tpu_custom_call.1} parent=11 // pred_fallthru
          _
        // Predicated region
        $region29: #{tpu_custom_call.1} parent=11 // pred_check
          %p501 = pneg %p214
        $region30: #{tpu_custom_call.1} parent=11 // pred_check_branch
          %503 = sbr.rel (%p501) target = $region32
        $region31: #{tpu_custom_call.1} parent=11 // pred_region
          _
        $region32: #{tpu_custom_call.1} parent=11 // pred_fallthru
          _
        // Predicated region
        $region33: #{tpu_custom_call.1} parent=11 // pred_check
          %p504 = pneg %p235
        $region34: #{tpu_custom_call.1} parent=11 // pred_check_branch
          %506 = sbr.rel (%p504) target = $region36
        $region35: #{tpu_custom_call.1} parent=11 // pred_region
          _
        $region36: #{tpu_custom_call.1} parent=11 // pred_fallthru
          _
        // Predicated region
        $region37: #{tpu_custom_call.1} parent=11 // pred_check
          %p507 = pneg %p256
        $region38: #{tpu_custom_call.1} parent=11 // pred_check_branch
          %509 = sbr.rel (%p507) target = $region40
        $region39: #{tpu_custom_call.1} parent=11 // pred_region
          _
        $region40: #{tpu_custom_call.1} parent=11 // pred_fallthru
          _
        // Predicated region
        $region41: #{tpu_custom_call.1} parent=11 // pred_check
          %p510 = pneg %p277
        $region42: #{tpu_custom_call.1} parent=11 // pred_check_branch
          %512 = sbr.rel (%p510) target = $region44
        $region43: #{tpu_custom_call.1} parent=11 // pred_region
          %s514 = ssub.s32 256, 256
          %515 = vsyncadd [#allocation9], %s514
          %s516 = sshll.u32 [#allocation8], 4
          %s517 = int_to_ptr.vmem [resolvable:$true] %s516
          %522 = dma.hbm_to_vmem [thread:$0]  %s10, 256, %s517, [#allocation9], 64, 64, 4
        $region44: #{tpu_custom_call.1} parent=11 // pred_fallthru
          _
        // Predicated region
        $region45: #{tpu_custom_call.1} parent=11 // pred_check
          %p523 = pneg %p298
        $region46: #{tpu_custom_call.1} parent=11 // pred_check_branch
          %525 = sbr.rel (%p523) target = $region48
        $region47: #{tpu_custom_call.1} parent=11 // pred_region
          %s527 = ssub.s32 16, 16
          %528 = vsyncadd [#allocation9], %s527
          %s530 = sshll.u32 [#allocation10], 4
          %s531 = int_to_ptr.vmem [resolvable:$true] %s530
          %533 = dma.hbm_to_vmem [thread:$0]  %s11, 16, %s531, [#allocation9]
        $region48: #{tpu_custom_call.1} parent=11 // pred_fallthru
          _
        // Predicated region
        $region49: #{tpu_custom_call.1} parent=11 // pred_check
          %p534 = pneg %p319
        $region50: #{tpu_custom_call.1} parent=11 // pred_check_branch
          %536 = sbr.rel (%p534) target = $region52
        $region51: #{tpu_custom_call.1} parent=11 // pred_region
          %s538 = ssub.s32 16, 16
          %539 = vsyncadd [#allocation12], %s538
          %s541 = sshll.u32 [#allocation11], 4
          %s542 = int_to_ptr.vmem [resolvable:$true] %s541
          %544 = dma.hbm_to_vmem [thread:$0]  %s12, 16, %s542, [#allocation12]
        $region52: #{tpu_custom_call.1} parent=11 // pred_fallthru
          _
        // Predicated region
        $region53: #{tpu_custom_call.1} parent=11 // pred_check
          %p545 = pneg %p340
        $region54: #{tpu_custom_call.1} parent=11 // pred_check_branch
          %547 = sbr.rel (%p545) target = $region56
        $region55: #{tpu_custom_call.1} parent=11 // pred_region
          %s549 = ssub.s32 16, 16
          %550 = vsyncadd [#allocation12], %s549
          %s552 = sshll.u32 [#allocation13], 4
          %s553 = int_to_ptr.vmem [resolvable:$true] %s552
          %555 = dma.hbm_to_vmem [thread:$0]  %s13, 16, %s553, [#allocation12]
        $region56: #{tpu_custom_call.1} parent=11 // pred_fallthru
          _
        // Predicated region
        $region57: #{tpu_custom_call.1} parent=11 // pred_check
          %p556 = pneg %p361
        $region58: #{tpu_custom_call.1} parent=11 // pred_check_branch
          %558 = sbr.rel (%p556) target = $region60
        $region59: #{tpu_custom_call.1} parent=11 // pred_region
          _
        $region60: #{tpu_custom_call.1} parent=11 // pred_fallthru
          _
        // Predicated region
        $region61: #{tpu_custom_call.1} parent=11 // pred_check
          %p559 = pneg %p382
        $region62: #{tpu_custom_call.1} parent=11 // pred_check_branch
          %561 = sbr.rel (%p559) target = $region64
        $region63: #{tpu_custom_call.1} parent=11 // pred_region
          _
        $region64: #{tpu_custom_call.1} parent=11 // pred_fallthru
          _
        // Predicated region
        $region65: #{tpu_custom_call.1} parent=11 // pred_check
          %p562 = pneg %p403
        $region66: #{tpu_custom_call.1} parent=11 // pred_check_branch
          %564 = sbr.rel (%p562) target = $region68
        $region67: #{tpu_custom_call.1} parent=11 // pred_region
          _
        $region68: #{tpu_custom_call.1} parent=11 // pred_fallthru
          _
        // Predicated region
        $region69: #{tpu_custom_call.1} parent=11 // pred_check
          %p565 = pneg %p424
        $region70: #{tpu_custom_call.1} parent=11 // pred_check_branch
          %567 = sbr.rel (%p565) target = $region72
        $region71: #{tpu_custom_call.1} parent=11 // pred_region
          _
        $region72: #{tpu_custom_call.1} parent=11 // pred_fallthru
          _
      $region12: #{tpu_custom_call.1} parent=5 // pred_fallthru
        _
      %p568 = scmp.lt.s32.totalorder %s31, 2
      // Predicated region
      $region73: #{tpu_custom_call.1} parent=5 // pred_check
        %p569 = pneg %p568
      $region74: #{tpu_custom_call.1} parent=5 // pred_check_branch
        %571 = sbr.rel (%p569) target = $region76
      $region75: #{tpu_custom_call.1} parent=5 // pred_region
        // Predicated region
        $region77: #{tpu_custom_call.1} parent=75 // pred_check
          %p572 = pneg %p51
        $region78: #{tpu_custom_call.1} parent=75 // pred_check_branch
          %574 = sbr.rel (%p572) target = $region80
        $region79: #{tpu_custom_call.1} parent=75 // pred_region
          %p575 = scmp.lt.s32.totalorder %s31, 1
          %s576 = scalar_select %p575, %s31, 1
          %s577 = smul.addr %s576, 8
          %s578 = scalar_lea.vmem %s0, %s577
        $region80: #{tpu_custom_call.1} parent=75 // pred_fallthru
          _
        // Predicated region
        $region81: #{tpu_custom_call.1} parent=75 // pred_check
          %p579 = pneg %p77
        $region82: #{tpu_custom_call.1} parent=75 // pred_check_branch
          %581 = sbr.rel (%p579) target = $region84
        $region83: #{tpu_custom_call.1} parent=75 // pred_region
          %p582 = scmp.lt.s32.totalorder %s31, 1
          %s583 = scalar_select %p582, %s31, 1
          %s584 = smul.addr %s583, 8
          %s585 = scalar_lea.vmem %s1, %s584
        $region84: #{tpu_custom_call.1} parent=75 // pred_fallthru
          _
        // Predicated region
        $region85: #{tpu_custom_call.1} parent=75 // pred_check
          %p586 = pneg %p103
        $region86: #{tpu_custom_call.1} parent=75 // pred_check_branch
          %588 = sbr.rel (%p586) target = $region88
        $region87: #{tpu_custom_call.1} parent=75 // pred_region
          %p589 = scmp.lt.s32.totalorder %s31, 1
          %s590 = scalar_select %p589, %s31, 1
          %s591 = smul.addr %s590, 8
          %s592 = scalar_lea.vmem %s2, %s591
        $region88: #{tpu_custom_call.1} parent=75 // pred_fallthru
          _
      $region76: #{tpu_custom_call.1} parent=5 // pred_fallthru
        _
      %p593 = scmp.le.s32.totalorder 1, %s31
      %p594 = scmp.lt.s32.totalorder %s31, 3
      %p595 = pnand %p593, %p594
      %p596 = pneg %p595
      // Predicated region
      $region89: #{tpu_custom_call.1} parent=5 // pred_check
        _
      $region90: #{tpu_custom_call.1} parent=5 // pred_check_branch
        %598 = sbr.rel (%p595) target = $region92
      $region91: #{tpu_custom_call.1} parent=5 // pred_region
        %s599 = ssub.s32 %s31, 1
        // Predicated region
        $region93: #{tpu_custom_call.1} parent=91 // pred_check
          %p600 = pneg %p151
        $region94: #{tpu_custom_call.1} parent=91 // pred_check_branch
          %602 = sbr.rel (%p600) target = $region96
        $region95: #{tpu_custom_call.1} parent=91 // pred_region
          %603 = dma.done [#allocation3], 16
        $region96: #{tpu_custom_call.1} parent=91 // pred_fallthru
          _
        // Predicated region
        $region97: #{tpu_custom_call.1} parent=91 // pred_check
          %p604 = pneg %p172
        $region98: #{tpu_custom_call.1} parent=91 // pred_check_branch
          %606 = sbr.rel (%p604) target = $region100
        $region99: #{tpu_custom_call.1} parent=91 // pred_region
          %607 = dma.done [#allocation6], 16
        $region100: #{tpu_custom_call.1} parent=91 // pred_fallthru
          _
        // Predicated region
        $region101: #{tpu_custom_call.1} parent=91 // pred_check
          %p608 = pneg %p193
        $region102: #{tpu_custom_call.1} parent=91 // pred_check_branch
          %610 = sbr.rel (%p608) target = $region104
        $region103: #{tpu_custom_call.1} parent=91 // pred_region
          %611 = dma.done [#allocation6], 16
        $region104: #{tpu_custom_call.1} parent=91 // pred_fallthru
          _
        // Predicated region
        $region105: #{tpu_custom_call.1} parent=91 // pred_check
          %p612 = pneg %p277
        $region106: #{tpu_custom_call.1} parent=91 // pred_check_branch
          %614 = sbr.rel (%p612) target = $region108
        $region107: #{tpu_custom_call.1} parent=91 // pred_region
          %615 = dma.done [#allocation9], 256
        $region108: #{tpu_custom_call.1} parent=91 // pred_fallthru
          _
        // Predicated region
        $region109: #{tpu_custom_call.1} parent=91 // pred_check
          %p616 = pneg %p298
        $region110: #{tpu_custom_call.1} parent=91 // pred_check_branch
          %618 = sbr.rel (%p616) target = $region112
        $region111: #{tpu_custom_call.1} parent=91 // pred_region
          %619 = dma.done [#allocation9], 16
        $region112: #{tpu_custom_call.1} parent=91 // pred_fallthru
          _
        // Predicated region
        $region113: #{tpu_custom_call.1} parent=91 // pred_check
          %p620 = pneg %p319
        $region114: #{tpu_custom_call.1} parent=91 // pred_check_branch
          %622 = sbr.rel (%p620) target = $region116
        $region115: #{tpu_custom_call.1} parent=91 // pred_region
          %623 = dma.done [#allocation12], 16
        $region116: #{tpu_custom_call.1} parent=91 // pred_fallthru
          _
        // Predicated region
        $region117: #{tpu_custom_call.1} parent=91 // pred_check
          %p624 = pneg %p340
        $region118: #{tpu_custom_call.1} parent=91 // pred_check_branch
          %626 = sbr.rel (%p624) target = $region120
        $region119: #{tpu_custom_call.1} parent=91 // pred_region
          %627 = dma.done [#allocation12], 16
        $region120: #{tpu_custom_call.1} parent=91 // pred_fallthru
          _
        %p628 = scmp.lt.s32.totalorder %s36, 1
        %s629 = scalar_select %p628, %s36, 1
        %s630 = smul.addr %s629, 8
        %s631 = scalar_lea.vmem %s0, %s630
        %p632 = pneg %p57
        %p633 = pneg %p54
        %p634 = scmp.lt.s32.totalorder %s36, 1
        %s635 = scalar_select %p634, %s36, 1
        %s636 = smul.addr %s635, 8
        %s637 = scalar_lea.vmem %s1, %s636
        %p638 = pneg %p83
        %p639 = pneg %p80
        %p640 = scmp.lt.s32.totalorder %s36, 1
        %s641 = scalar_select %p640, %s36, 1
        %s642 = smul.addr %s641, 8
        %s643 = scalar_lea.vmem %s2, %s642
        %p644 = pneg %p109
        %p645 = pneg %p106
        %p646 = pneg %p130
        %p647 = pneg %p127
        %p648 = pneg %p151
        %p649 = pneg %p148
        %p650 = pneg %p172
        %p651 = pneg %p169
        %p652 = pneg %p193
        %p653 = pneg %p190
        %p654 = pneg %p214
        %p655 = pneg %p211
        %p656 = pneg %p235
        %p657 = pneg %p232
        %p658 = pneg %p256
        %p659 = pneg %p253
        %p660 = pneg %p277
        %p661 = pneg %p274
        %p662 = pneg %p298
        %p663 = pneg %p295
        %p664 = pneg %p319
        %p665 = pneg %p316
        %p666 = pneg %p340
        %p667 = pneg %p337
        %p668 = pneg %p361
        %p669 = pneg %p358
        %p670 = pneg %p382
        %p671 = pneg %p379
        %p672 = pneg %p403
        %p673 = pneg %p400
        %p674 = pneg %p424
        %p675 = pneg %p421
        %p676 = pneg %p450
        %p677 = pneg %p447
        %s678 = sand.u32 %s437, 1
        %s679 = scalar_lea.sflag [#allocation4], %s678
        %s680 = sand.u32 %s437, 1
        %s681 = smul.addr %s680, 8
        %s682 = scalar_lea.vmem [#allocation14], %s681
        %p683 = scmp.lt.s32.totalorder %s36, 1
        %s684 = scalar_select %p683, %s36, 1
        %s685 = smul.addr %s684, 8
        %s686 = scalar_lea.vmem %s0, %s685
        %p687 = scmp.lt.s32.totalorder %s36, 1
        %s688 = scalar_select %p687, %s36, 1
        %s689 = smul.addr %s688, 8
        %s690 = scalar_lea.vmem %s1, %s689
        %p691 = scmp.lt.s32.totalorder %s36, 1
        %s692 = scalar_select %p691, %s36, 1
        %s693 = smul.addr %s692, 8
        %s694 = scalar_lea.vmem %s2, %s693
        %v696 = vld [vmem:[%s686] sm:$0xff]
        %v697 = vld [vmem:[%s690] sm:$0xff]
        %v698 = vld [vmem:[%s3] sm:$0x1]
        %v699 = vld [vmem:[#allocation2] sm:$0x1]
        %vm700 = vcmask 261120
        %v701 = vsel %vm700, %v696, 0.0
        %702 = vadd.xlane.f32.xlu0 %v701
        %v703 = vpop.xlane.xlu0 %702
        %v704 = vrcp.pop 32.0
        %v705 = vmul.f32 %v703, %v704
        %v706 = vsub.f32 %v696, %v705
        %v707 = vmul.f32 %v706, %v706
        %v708 = vsel %vm700, %v707, 0.0
        %709 = vadd.xlane.f32.xlu0 %v708
        %v710 = vpop.xlane.xlu0 %709
        %v711 = vmul.f32 %v710, %v704
        %v712 = vadd.f32 %v711, 1e-05
        %v713 = vrsqrt.pop %v712
        %v714 = vmul.f32 %v706, %v713
        %v716 = vlaneseq
        %v717 = vshrl.u32 %v716, 7
        %v718 = vsub.s32 0, %v717
        %v719 = vrot.slane %v698, %v718
        %v721 = vmul.f32 %v714, %v719
        %v723 = vlaneseq
        %v724 = vshrl.u32 %v723, 7
        %v725 = vsub.s32 0, %v724
        %v726 = vrot.slane %v699, %v725
        %v728 = vadd.f32 %v721, %v726
        %v729 = vpack.c.bf16 %v728, %v728
        %v730 = vld [vmem:[#allocation5] sm:$0x1]
        %v731 = vld [vmem:[#allocation7] sm:$0x1]
        %v732 = vsel %vm700, %v697, 0.0
        %733 = vadd.xlane.f32.xlu0 %v732
        %v734 = vpop.xlane.xlu0 %733
        %v735 = vmul.f32 %v734, %v704
        %v736 = vsub.f32 %v697, %v735
        %v737 = vmul.f32 %v736, %v736
        %v738 = vsel %vm700, %v737, 0.0
        %739 = vadd.xlane.f32.xlu0 %v738
        %v740 = vpop.xlane.xlu0 %739
        %v741 = vmul.f32 %v740, %v704
        %v742 = vadd.f32 %v741, 1e-05
        %v743 = vrsqrt.pop %v742
        %v744 = vmul.f32 %v736, %v743
        %v746 = vlaneseq
        %v747 = vshrl.u32 %v746, 7
        %v748 = vsub.s32 0, %v747
        %v749 = vrot.slane %v730, %v748
        %v751 = vmul.f32 %v744, %v749
        %v753 = vlaneseq
        %v754 = vshrl.u32 %v753, 7
        %v755 = vsub.s32 0, %v754
        %v756 = vrot.slane %v731, %v755
        %v758 = vadd.f32 %v751, %v756
        %v759 = vpack.c.bf16 %v758, %v758
        %v760 = vld [vmem:[%s7] sm:$0xf]
        %v761 = vld [vmem:[%s7 + $0x4] sm:$0xf]
        %v762 = vld [vmem:[%s7 + $0x8] sm:$0xf]
        %v763 = vld [vmem:[%s7 + $0xc] sm:$0xf]
        %v768 = vunpack.c.l.b16 %v760
        %v769 = vunpack.c.l.b16 %v761
        %v770 = vunpack.c.l.b16 %v762
        %v771 = vunpack.c.l.b16 %v763
        %v772 = vpack.c.b16 %v769, %v768
        %v773 = vpack.c.b16 %v771, %v770
        %v777 = vsel %vm700, %v729, 0
        %779 = vmatprep.subr.bf16.mxu0 0
        %780 = vmatpush1.bf16.msra.mxu0 %v772
        %781 = vmatprep.subr.bf16.mxu0 0
        %782 = vmatpush1.bf16.msra.mxu0 %v773
        %783 = vmatprep.subr.bf16.mxu0 0
        %784 = vmatpush1.bf16.msra.mxu0 0
        %785 = vmatprep.subr.bf16.mxu0 0
        %786 = vmatpush1.bf16.msra.mxu0 0
        %787 = vmatprep.subr.bf16.mxu0 0
        %788 = vmatpush1.bf16.msra.mxu0 0
        %789 = vmatprep.subr.bf16.mxu0 0
        %790 = vmatpush1.bf16.msra.mxu0 0
        %791 = vmatprep.subr.bf16.mxu0 0
        %792 = vmatpush1.bf16.msra.mxu0 0
        %793 = vmatprep.subr.bf16.mxu0 0
        %794 = vmatpush1.bf16.msra.mxu0 0
        %795 = vmatprep.subr.bf16.mxu0 0
        %796 = vmatpush1.bf16.msra.mxu0 0
        %797 = vmatprep.subr.bf16.mxu0 0
        %798 = vmatpush1.bf16.msra.mxu0 0
        %799 = vmatprep.subr.bf16.mxu0 0
        %800 = vmatpush1.bf16.msra.mxu0 0
        %801 = vmatprep.subr.bf16.mxu0 0
        %802 = vmatpush1.bf16.msra.mxu0 0
        %803 = vmatprep.subr.bf16.mxu0 0
        %804 = vmatpush1.bf16.msra.mxu0 0
        %805 = vmatprep.subr.bf16.mxu0 0
        %806 = vmatpush1.bf16.msra.mxu0 0
        %807 = vmatprep.subr.bf16.mxu0 0
        %808 = vmatpush1.bf16.msra.mxu0 0
        %809 = vmatprep.subr.bf16.mxu0 0
        %810 = vmatpush1.bf16.msra.mxu0 0
        %811 = vmatprep.mubr.bf16.mxu0 0
        %812 = vmatmul.mubr.bf16.gmra.mrb[0].mxu0 %v777
        %v813 = vpop.f32.mrb[0].mxu0
        %v814 = vadd.f32 0.0, %v813
        %v815 = vpop.f32.mrb[0].mxu0
        %v816 = vpop.f32.mrb[0].mxu0
        %v817 = vpop.f32.mrb[0].mxu0
        %818 = vdwg.mxu0
        %v819 = vld [vmem:[%s8] sm:$0xf]
        %v820 = vld [vmem:[%s8 + $0x4] sm:$0xf]
        %v821 = vld [vmem:[%s8 + $0x8] sm:$0xf]
        %v822 = vld [vmem:[%s8 + $0xc] sm:$0xf]
        %v827 = vunpack.c.l.b16 %v819
        %v828 = vunpack.c.l.b16 %v820
        %v829 = vunpack.c.l.b16 %v821
        %v830 = vunpack.c.l.b16 %v822
        %v831 = vpack.c.b16 %v828, %v827
        %v832 = vpack.c.b16 %v830, %v829
        %v836 = vsel %vm700, %v759, 0
        %838 = vmatprep.subr.bf16.mxu0 0
        %839 = vmatpush1.bf16.msra.mxu0 %v831
        %840 = vmatprep.subr.bf16.mxu0 0
        %841 = vmatpush1.bf16.msra.mxu0 %v832
        %842 = vmatprep.subr.bf16.mxu0 0
        %843 = vmatpush1.bf16.msra.mxu0 0
        %844 = vmatprep.subr.bf16.mxu0 0
        %845 = vmatpush1.bf16.msra.mxu0 0
        %846 = vmatprep.subr.bf16.mxu0 0
        %847 = vmatpush1.bf16.msra.mxu0 0
        %848 = vmatprep.subr.bf16.mxu0 0
        %849 = vmatpush1.bf16.msra.mxu0 0
        %850 = vmatprep.subr.bf16.mxu0 0
        %851 = vmatpush1.bf16.msra.mxu0 0
        %852 = vmatprep.subr.bf16.mxu0 0
        %853 = vmatpush1.bf16.msra.mxu0 0
        %854 = vmatprep.subr.bf16.mxu0 0
        %855 = vmatpush1.bf16.msra.mxu0 0
        %856 = vmatprep.subr.bf16.mxu0 0
        %857 = vmatpush1.bf16.msra.mxu0 0
        %858 = vmatprep.subr.bf16.mxu0 0
        %859 = vmatpush1.bf16.msra.mxu0 0
        %860 = vmatprep.subr.bf16.mxu0 0
        %861 = vmatpush1.bf16.msra.mxu0 0
        %862 = vmatprep.subr.bf16.mxu0 0
        %863 = vmatpush1.bf16.msra.mxu0 0
        %864 = vmatprep.subr.bf16.mxu0 0
        %865 = vmatpush1.bf16.msra.mxu0 0
        %866 = vmatprep.subr.bf16.mxu0 0
        %867 = vmatpush1.bf16.msra.mxu0 0
        %868 = vmatprep.subr.bf16.mxu0 0
        %869 = vmatpush1.bf16.msra.mxu0 0
        %870 = vmatprep.mubr.bf16.mxu0 0
        %871 = vmatmul.mubr.bf16.gmra.mrb[0].mxu0 %v836
        %v872 = vpop.f32.mrb[0].mxu0
        %v873 = vadd.f32 0.0, %v872
        %v874 = vpop.f32.mrb[0].mxu0
        %v875 = vpop.f32.mrb[0].mxu0
        %v876 = vpop.f32.mrb[0].mxu0
        %877 = vdwg.mxu0
        %v878 = vld [vmem:[%s9] sm:$0xf]
        %v879 = vld [vmem:[%s9 + $0x4] sm:$0xf]
        %v880 = vld [vmem:[%s9 + $0x8] sm:$0xf]
        %v881 = vld [vmem:[%s9 + $0xc] sm:$0xf]
        %v886 = vunpack.c.l.b16 %v878
        %v887 = vunpack.c.l.b16 %v879
        %v888 = vunpack.c.l.b16 %v880
        %v889 = vunpack.c.l.b16 %v881
        %v890 = vpack.c.b16 %v887, %v886
        %v891 = vpack.c.b16 %v889, %v888
        %894 = vmatprep.subr.bf16.mxu0 0
        %895 = vmatpush1.bf16.msra.mxu0 %v890
        %896 = vmatprep.subr.bf16.mxu0 0
        %897 = vmatpush1.bf16.msra.mxu0 %v891
        %898 = vmatprep.subr.bf16.mxu0 0
        %899 = vmatpush1.bf16.msra.mxu0 0
        %900 = vmatprep.subr.bf16.mxu0 0
        %901 = vmatpush1.bf16.msra.mxu0 0
        %902 = vmatprep.subr.bf16.mxu0 0
        %903 = vmatpush1.bf16.msra.mxu0 0
        %904 = vmatprep.subr.bf16.mxu0 0
        %905 = vmatpush1.bf16.msra.mxu0 0
        %906 = vmatprep.subr.bf16.mxu0 0
        %907 = vmatpush1.bf16.msra.mxu0 0
        %908 = vmatprep.subr.bf16.mxu0 0
        %909 = vmatpush1.bf16.msra.mxu0 0
        %910 = vmatprep.subr.bf16.mxu0 0
        %911 = vmatpush1.bf16.msra.mxu0 0
        %912 = vmatprep.subr.bf16.mxu0 0
        %913 = vmatpush1.bf16.msra.mxu0 0
        %914 = vmatprep.subr.bf16.mxu0 0
        %915 = vmatpush1.bf16.msra.mxu0 0
        %916 = vmatprep.subr.bf16.mxu0 0
        %917 = vmatpush1.bf16.msra.mxu0 0
        %918 = vmatprep.subr.bf16.mxu0 0
        %919 = vmatpush1.bf16.msra.mxu0 0
        %920 = vmatprep.subr.bf16.mxu0 0
        %921 = vmatpush1.bf16.msra.mxu0 0
        %922 = vmatprep.subr.bf16.mxu0 0
        %923 = vmatpush1.bf16.msra.mxu0 0
        %924 = vmatprep.subr.bf16.mxu0 0
        %925 = vmatpush1.bf16.msra.mxu0 0
        %926 = vmatprep.mubr.bf16.mxu0 0
        %927 = vmatmul.mubr.bf16.gmra.mrb[0].mxu0 %v836
        %v928 = vpop.f32.mrb[0].mxu0
        %v929 = vadd.f32 0.0, %v928
        %v930 = vpop.f32.mrb[0].mxu0
        %v931 = vpop.f32.mrb[0].mxu0
        %v932 = vpop.f32.mrb[0].mxu0
        %933 = vdwg.mxu0
        %935 = vrot.lane.b32.xlu0 %v814, 120
        %v936 = vpop.permute.xlu0 %935
        %938 = vrot.lane.b32.xlu0 %v814, 112
        %v939 = vpop.permute.xlu0 %938
        %941 = vrot.lane.b32.xlu0 %v814, 104
        %v942 = vpop.permute.xlu0 %941
        %v944 = vpack.c.bf16 %v814, %v814
        %v945 = vpack.c.bf16 %v936, %v936
        %v946 = vpack.c.bf16 %v939, %v939
        %v947 = vpack.c.bf16 %v942, %v942
        %949 = vrot.lane.b32.xlu0 %v873, 120
        %v950 = vpop.permute.xlu0 %949
        %952 = vrot.lane.b32.xlu0 %v873, 112
        %v953 = vpop.permute.xlu0 %952
        %955 = vrot.lane.b32.xlu0 %v873, 104
        %v956 = vpop.permute.xlu0 %955
        %v958 = vpack.c.bf16 %v873, %v873
        %v959 = vpack.c.bf16 %v950, %v950
        %v960 = vpack.c.bf16 %v953, %v953
        %v961 = vpack.c.bf16 %v956, %v956
        %963 = vrot.lane.b32.xlu0 %v929, 120
        %v964 = vpop.permute.xlu0 %963
        %966 = vrot.lane.b32.xlu0 %v929, 112
        %v967 = vpop.permute.xlu0 %966
        %969 = vrot.lane.b32.xlu0 %v929, 104
        %v970 = vpop.permute.xlu0 %969
        %v972 = vpack.c.bf16 %v929, %v929
        %v973 = vpack.c.bf16 %v964, %v964
        %v974 = vpack.c.bf16 %v967, %v967
        %v975 = vpack.c.bf16 %v970, %v970
        %vm976 = vcmask 64512
        %v978 = vsel %vm976, %v944, 0
        %v981 = vsel %vm976, %v958, 0
        %983 = vmatprep.subr.bf16.mxu0 0
        %984 = vmatpush1.bf16.xpose.msra.mxu0 %v981
        %985 = vmatprep.subr.bf16.mxu0 0
        %986 = vmatpush1.bf16.xpose.msra.mxu0 0
        %987 = vmatprep.subr.bf16.mxu0 0
        %988 = vmatpush1.bf16.xpose.msra.mxu0 0
        %989 = vmatprep.subr.bf16.mxu0 0
        %990 = vmatpush1.bf16.xpose.msra.mxu0 0
        %991 = vmatprep.subr.bf16.mxu0 0
        %992 = vmatpush1.bf16.xpose.msra.mxu0 0
        %993 = vmatprep.subr.bf16.mxu0 0
        %994 = vmatpush1.bf16.xpose.msra.mxu0 0
        %995 = vmatprep.subr.bf16.mxu0 0
        %996 = vmatpush1.bf16.xpose.msra.mxu0 0
        %997 = vmatprep.subr.bf16.mxu0 0
        %998 = vmatpush1.bf16.xpose.msra.mxu0 0
        %999 = vmatprep.subr.bf16.mxu0 0
        %1000 = vmatpush1.bf16.xpose.msra.mxu0 0
        %1001 = vmatprep.subr.bf16.mxu0 0
        %1002 = vmatpush1.bf16.xpose.msra.mxu0 0
        %1003 = vmatprep.subr.bf16.mxu0 0
        %1004 = vmatpush1.bf16.xpose.msra.mxu0 0
        %1005 = vmatprep.subr.bf16.mxu0 0
        %1006 = vmatpush1.bf16.xpose.msra.mxu0 0
        %1007 = vmatprep.subr.bf16.mxu0 0
        %1008 = vmatpush1.bf16.xpose.msra.mxu0 0
        %1009 = vmatprep.subr.bf16.mxu0 0
        %1010 = vmatpush1.bf16.xpose.msra.mxu0 0
        %1011 = vmatprep.subr.bf16.mxu0 0
        %1012 = vmatpush1.bf16.xpose.msra.mxu0 0
        %1013 = vmatprep.subr.bf16.mxu0 0
        %1014 = vmatpush1.bf16.xpose.msra.mxu0 0
        %1015 = vmatprep.mubr.bf16.mxu0 0
        %1016 = vmatmul.mubr.bf16.gmra.mrb[0].mxu0 %v978
        %v1017 = vpop.f32.mrb[0].mxu0
        %v1018 = vadd.f32 0.0, %v1017
        %v1019 = vpop.f32.mrb[0].mxu0
        %v1020 = vpop.f32.mrb[0].mxu0
        %v1021 = vpop.f32.mrb[0].mxu0
        %1022 = vdwg.mxu0
        %v1024 = vsel %vm976, %v945, 0
        %v1027 = vsel %vm976, %v959, 0
        %1029 = vmatprep.subr.bf16.mxu0 0
        %1030 = vmatpush1.bf16.xpose.msra.mxu0 %v1027
        %1031 = vmatprep.subr.bf16.mxu0 0
        %1032 = vmatpush1.bf16.xpose.msra.mxu0 0
        %1033 = vmatprep.subr.bf16.mxu0 0
        %1034 = vmatpush1.bf16.xpose.msra.mxu0 0
        %1035 = vmatprep.subr.bf16.mxu0 0
        %1036 = vmatpush1.bf16.xpose.msra.mxu0 0
        %1037 = vmatprep.subr.bf16.mxu0 0
        %1038 = vmatpush1.bf16.xpose.msra.mxu0 0
        %1039 = vmatprep.subr.bf16.mxu0 0
        %1040 = vmatpush1.bf16.xpose.msra.mxu0 0
        %1041 = vmatprep.subr.bf16.mxu0 0
        %1042 = vmatpush1.bf16.xpose.msra.mxu0 0
        %1043 = vmatprep.subr.bf16.mxu0 0
        %1044 = vmatpush1.bf16.xpose.msra.mxu0 0
        %1045 = vmatprep.subr.bf16.mxu0 0
        %1046 = vmatpush1.bf16.xpose.msra.mxu0 0
        %1047 = vmatprep.subr.bf16.mxu0 0
        %1048 = vmatpush1.bf16.xpose.msra.mxu0 0
        %1049 = vmatprep.subr.bf16.mxu0 0
        %1050 = vmatpush1.bf16.xpose.msra.mxu0 0
        %1051 = vmatprep.subr.bf16.mxu0 0
        %1052 = vmatpush1.bf16.xpose.msra.mxu0 0
        %1053 = vmatprep.subr.bf16.mxu0 0
        %1054 = vmatpush1.bf16.xpose.msra.mxu0 0
        %1055 = vmatprep.subr.bf16.mxu0 0
        %1056 = vmatpush1.bf16.xpose.msra.mxu0 0
        %1057 = vmatprep.subr.bf16.mxu0 0
        %1058 = vmatpush1.bf16.xpose.msra.mxu0 0
        %1059 = vmatprep.subr.bf16.mxu0 0
        %1060 = vmatpush1.bf16.xpose.msra.mxu0 0
        %1061 = vmatprep.mubr.bf16.mxu0 0
        %1062 = vmatmul.mubr.bf16.gmra.mrb[0].mxu0 %v1024
        %v1063 = vpop.f32.mrb[0].mxu0
        %v1064 = vadd.f32 0.0, %v1063
        %v1065 = vpop.f32.mrb[0].mxu0
        %v1066 = vpop.f32.mrb[0].mxu0
        %v1067 = vpop.f32.mrb[0].mxu0
        %1068 = vdwg.mxu0
        %v1070 = vsel %vm976, %v946, 0
        %v1073 = vsel %vm976, %v960, 0
        %1075 = vmatprep.subr.bf16.mxu0 0
        %1076 = vmatpush1.bf16.xpose.msra.mxu0 %v1073
        %1077 = vmatprep.subr.bf16.mxu0 0
        %1078 = vmatpush1.bf16.xpose.msra.mxu0 0
        %1079 = vmatprep.subr.bf16.mxu0 0
        %1080 = vmatpush1.bf16.xpose.msra.mxu0 0
        %1081 = vmatprep.subr.bf16.mxu0 0
        %1082 = vmatpush1.bf16.xpose.msra.mxu0 0
        %1083 = vmatprep.subr.bf16.mxu0 0
        %1084 = vmatpush1.bf16.xpose.msra.mxu0 0
        %1085 = vmatprep.subr.bf16.mxu0 0
        %1086 = vmatpush1.bf16.xpose.msra.mxu0 0
        %1087 = vmatprep.subr.bf16.mxu0 0
        %1088 = vmatpush1.bf16.xpose.msra.mxu0 0
        %1089 = vmatprep.subr.bf16.mxu0 0
        %1090 = vmatpush1.bf16.xpose.msra.mxu0 0
        %1091 = vmatprep.subr.bf16.mxu0 0
        %1092 = vmatpush1.bf16.xpose.msra.mxu0 0
        %1093 = vmatprep.subr.bf16.mxu0 0
        %1094 = vmatpush1.bf16.xpose.msra.mxu0 0
        %1095 = vmatprep.subr.bf16.mxu0 0
        %1096 = vmatpush1.bf16.xpose.msra.mxu0 0
        %1097 = vmatprep.subr.bf16.mxu0 0
        %1098 = vmatpush1.bf16.xpose.msra.mxu0 0
        %1099 = vmatprep.subr.bf16.mxu0 0
        %1100 = vmatpush1.bf16.xpose.msra.mxu0 0
        %1101 = vmatprep.subr.bf16.mxu0 0
        %1102 = vmatpush1.bf16.xpose.msra.mxu0 0
        %1103 = vmatprep.subr.bf16.mxu0 0
        %1104 = vmatpush1.bf16.xpose.msra.mxu0 0
        %1105 = vmatprep.subr.bf16.mxu0 0
        %1106 = vmatpush1.bf16.xpose.msra.mxu0 0
        %1107 = vmatprep.mubr.bf16.mxu0 0
        %1108 = vmatmul.mubr.bf16.gmra.mrb[0].mxu0 %v1070
        %v1109 = vpop.f32.mrb[0].mxu0
        %v1110 = vadd.f32 0.0, %v1109
        %v1111 = vpop.f32.mrb[0].mxu0
        %v1112 = vpop.f32.mrb[0].mxu0
        %v1113 = vpop.f32.mrb[0].mxu0
        %1114 = vdwg.mxu0
        %v1116 = vsel %vm976, %v947, 0
        %v1119 = vsel %vm976, %v961, 0
        %1121 = vmatprep.subr.bf16.mxu0 0
        %1122 = vmatpush1.bf16.xpose.msra.mxu0 %v1119
        %1123 = vmatprep.subr.bf16.mxu0 0
        %1124 = vmatpush1.bf16.xpose.msra.mxu0 0
        %1125 = vmatprep.subr.bf16.mxu0 0
        %1126 = vmatpush1.bf16.xpose.msra.mxu0 0
        %1127 = vmatprep.subr.bf16.mxu0 0
        %1128 = vmatpush1.bf16.xpose.msra.mxu0 0
        %1129 = vmatprep.subr.bf16.mxu0 0
        %1130 = vmatpush1.bf16.xpose.msra.mxu0 0
        %1131 = vmatprep.subr.bf16.mxu0 0
        %1132 = vmatpush1.bf16.xpose.msra.mxu0 0
        %1133 = vmatprep.subr.bf16.mxu0 0
        %1134 = vmatpush1.bf16.xpose.msra.mxu0 0
        %1135 = vmatprep.subr.bf16.mxu0 0
        %1136 = vmatpush1.bf16.xpose.msra.mxu0 0
        %1137 = vmatprep.subr.bf16.mxu0 0
        %1138 = vmatpush1.bf16.xpose.msra.mxu0 0
        %1139 = vmatprep.subr.bf16.mxu0 0
        %1140 = vmatpush1.bf16.xpose.msra.mxu0 0
        %1141 = vmatprep.subr.bf16.mxu0 0
        %1142 = vmatpush1.bf16.xpose.msra.mxu0 0
        %1143 = vmatprep.subr.bf16.mxu0 0
        %1144 = vmatpush1.bf16.xpose.msra.mxu0 0
        %1145 = vmatprep.subr.bf16.mxu0 0
        %1146 = vmatpush1.bf16.xpose.msra.mxu0 0
        %1147 = vmatprep.subr.bf16.mxu0 0
        %1148 = vmatpush1.bf16.xpose.msra.mxu0 0
        %1149 = vmatprep.subr.bf16.mxu0 0
        %1150 = vmatpush1.bf16.xpose.msra.mxu0 0
        %1151 = vmatprep.subr.bf16.mxu0 0
        %1152 = vmatpush1.bf16.xpose.msra.mxu0 0
        %1153 = vmatprep.mubr.bf16.mxu0 0
        %1154 = vmatmul.mubr.bf16.gmra.mrb[0].mxu0 %v1116
        %v1155 = vpop.f32.mrb[0].mxu0
        %v1156 = vadd.f32 0.0, %v1155
        %v1157 = vpop.f32.mrb[0].mxu0
        %v1158 = vpop.f32.mrb[0].mxu0
        %v1159 = vpop.f32.mrb[0].mxu0
        %1160 = vdwg.mxu0
        %v1161 = vld [vmem:[%s694] sm:$0xff]
        %v1162 = vadd.f32 %v1018, %v1161
        %v1163 = vadd.f32 %v1064, %v1161
        %v1164 = vadd.f32 %v1110, %v1161
        %v1165 = vadd.f32 %v1156, %v1161
        %v1166 = vsel %vm976, %v1162, -inf
        %1167 = vmax.xlane.f32.xlu0 %v1166
        %v1168 = vpop.xlane.xlu0 %1167
        %v1169 = vsel %vm976, %v1163, -inf
        %1170 = vmax.xlane.f32.xlu0 %v1169
        %v1171 = vpop.xlane.xlu0 %1170
        %v1172 = vsel %vm976, %v1164, -inf
        %1173 = vmax.xlane.f32.xlu0 %v1172
        %v1174 = vpop.xlane.xlu0 %1173
        %v1175 = vsel %vm976, %v1165, -inf
        %1176 = vmax.xlane.f32.xlu0 %v1175
        %v1177 = vpop.xlane.xlu0 %1176
        %v1178 = vsub.f32 %v1162, %v1168
        %v1179 = vsub.f32 %v1163, %v1171
        %v1180 = vsub.f32 %v1164, %v1174
        %v1181 = vsub.f32 %v1165, %v1177
        %v1182 = vmul.f32 %v1178, 1.442695
        %v1183 = vpow.pop %v1182
        %v1184 = vmul.f32 %v1179, 1.442695
        %v1185 = vpow.pop %v1184
        %v1186 = vmul.f32 %v1180, 1.442695
        %v1187 = vpow.pop %v1186
        %v1188 = vmul.f32 %v1181, 1.442695
        %v1189 = vpow.pop %v1188
        %v1190 = vsel %vm976, %v1183, 0.0
        %1191 = vadd.xlane.f32.xlu0 %v1190
        %v1192 = vpop.xlane.xlu0 %1191
        %v1193 = vsel %vm976, %v1185, 0.0
        %1194 = vadd.xlane.f32.xlu0 %v1193
        %v1195 = vpop.xlane.xlu0 %1194
        %v1196 = vsel %vm976, %v1187, 0.0
        %1197 = vadd.xlane.f32.xlu0 %v1196
        %v1198 = vpop.xlane.xlu0 %1197
        %v1199 = vsel %vm976, %v1189, 0.0
        %1200 = vadd.xlane.f32.xlu0 %v1199
        %v1201 = vpop.xlane.xlu0 %1200
        %v1202 = vrcp.pop %v1192
        %v1203 = vrcp.pop %v1195
        %v1204 = vrcp.pop %v1198
        %v1205 = vrcp.pop %v1201
        %v1206 = vmul.f32 %v1183, %v1202
        %v1207 = vmul.f32 %v1185, %v1203
        %v1208 = vmul.f32 %v1187, %v1204
        %v1209 = vmul.f32 %v1189, %v1205
        %v1210 = vpack.c.bf16 %v1206, %v1206
        %v1211 = vpack.c.bf16 %v1207, %v1207
        %v1212 = vpack.c.bf16 %v1208, %v1208
        %v1213 = vpack.c.bf16 %v1209, %v1209
        %v1215 = vsel %vm976, %v1210, 0
        %vm1217 = vcmask 1043456
        %v1219 = vsel %vm1217, %v972, 0
        %1221 = vmatprep.subr.bf16.mxu0 0
        %1222 = vmatpush1.bf16.msra.mxu0 %v1219
        %1223 = vmatprep.subr.bf16.mxu0 0
        %1224 = vmatpush1.bf16.msra.mxu0 0
        %1225 = vmatprep.subr.bf16.mxu0 0
        %1226 = vmatpush1.bf16.msra.mxu0 0
        %1227 = vmatprep.subr.bf16.mxu0 0
        %1228 = vmatpush1.bf16.msra.mxu0 0
        %1229 = vmatprep.subr.bf16.mxu0 0
        %1230 = vmatpush1.bf16.msra.mxu0 0
        %1231 = vmatprep.subr.bf16.mxu0 0
        %1232 = vmatpush1.bf16.msra.mxu0 0
        %1233 = vmatprep.subr.bf16.mxu0 0
        %1234 = vmatpush1.bf16.msra.mxu0 0
        %1235 = vmatprep.subr.bf16.mxu0 0
        %1236 = vmatpush1.bf16.msra.mxu0 0
        %1237 = vmatprep.subr.bf16.mxu0 0
        %1238 = vmatpush1.bf16.msra.mxu0 0
        %1239 = vmatprep.subr.bf16.mxu0 0
        %1240 = vmatpush1.bf16.msra.mxu0 0
        %1241 = vmatprep.subr.bf16.mxu0 0
        %1242 = vmatpush1.bf16.msra.mxu0 0
        %1243 = vmatprep.subr.bf16.mxu0 0
        %1244 = vmatpush1.bf16.msra.mxu0 0
        %1245 = vmatprep.subr.bf16.mxu0 0
        %1246 = vmatpush1.bf16.msra.mxu0 0
        %1247 = vmatprep.subr.bf16.mxu0 0
        %1248 = vmatpush1.bf16.msra.mxu0 0
        %1249 = vmatprep.subr.bf16.mxu0 0
        %1250 = vmatpush1.bf16.msra.mxu0 0
        %1251 = vmatprep.subr.bf16.mxu0 0
        %1252 = vmatpush1.bf16.msra.mxu0 0
        %1253 = vmatprep.mubr.bf16.mxu0 0
        %1254 = vmatmul.mubr.bf16.gmra.mrb[0].mxu0 %v1215
        %v1255 = vpop.f32.mrb[0].mxu0
        %v1256 = vadd.f32 0.0, %v1255
        %v1257 = vpop.f32.mrb[0].mxu0
        %v1258 = vpop.f32.mrb[0].mxu0
        %v1259 = vpop.f32.mrb[0].mxu0
        %1260 = vdwg.mxu0
        %v1262 = vsel %vm976, %v1211, 0
        %v1265 = vsel %vm1217, %v973, 0
        %1267 = vmatprep.subr.bf16.mxu0 0
        %1268 = vmatpush1.bf16.msra.mxu0 %v1265
        %1269 = vmatprep.subr.bf16.mxu0 0
        %1270 = vmatpush1.bf16.msra.mxu0 0
        %1271 = vmatprep.subr.bf16.mxu0 0
        %1272 = vmatpush1.bf16.msra.mxu0 0
        %1273 = vmatprep.subr.bf16.mxu0 0
        %1274 = vmatpush1.bf16.msra.mxu0 0
        %1275 = vmatprep.subr.bf16.mxu0 0
        %1276 = vmatpush1.bf16.msra.mxu0 0
        %1277 = vmatprep.subr.bf16.mxu0 0
        %1278 = vmatpush1.bf16.msra.mxu0 0
        %1279 = vmatprep.subr.bf16.mxu0 0
        %1280 = vmatpush1.bf16.msra.mxu0 0
        %1281 = vmatprep.subr.bf16.mxu0 0
        %1282 = vmatpush1.bf16.msra.mxu0 0
        %1283 = vmatprep.subr.bf16.mxu0 0
        %1284 = vmatpush1.bf16.msra.mxu0 0
        %1285 = vmatprep.subr.bf16.mxu0 0
        %1286 = vmatpush1.bf16.msra.mxu0 0
        %1287 = vmatprep.subr.bf16.mxu0 0
        %1288 = vmatpush1.bf16.msra.mxu0 0
        %1289 = vmatprep.subr.bf16.mxu0 0
        %1290 = vmatpush1.bf16.msra.mxu0 0
        %1291 = vmatprep.subr.bf16.mxu0 0
        %1292 = vmatpush1.bf16.msra.mxu0 0
        %1293 = vmatprep.subr.bf16.mxu0 0
        %1294 = vmatpush1.bf16.msra.mxu0 0
        %1295 = vmatprep.subr.bf16.mxu0 0
        %1296 = vmatpush1.bf16.msra.mxu0 0
        %1297 = vmatprep.subr.bf16.mxu0 0
        %1298 = vmatpush1.bf16.msra.mxu0 0
        %1299 = vmatprep.mubr.bf16.mxu0 0
        %1300 = vmatmul.mubr.bf16.gmra.mrb[0].mxu0 %v1262
        %v1301 = vpop.f32.mrb[0].mxu0
        %v1302 = vadd.f32 0.0, %v1301
        %v1303 = vpop.f32.mrb[0].mxu0
        %v1304 = vpop.f32.mrb[0].mxu0
        %v1305 = vpop.f32.mrb[0].mxu0
        %1306 = vdwg.mxu0
        %v1308 = vsel %vm976, %v1212, 0
        %v1311 = vsel %vm1217, %v974, 0
        %1313 = vmatprep.subr.bf16.mxu0 0
        %1314 = vmatpush1.bf16.msra.mxu0 %v1311
        %1315 = vmatprep.subr.bf16.mxu0 0
        %1316 = vmatpush1.bf16.msra.mxu0 0
        %1317 = vmatprep.subr.bf16.mxu0 0
        %1318 = vmatpush1.bf16.msra.mxu0 0
        %1319 = vmatprep.subr.bf16.mxu0 0
        %1320 = vmatpush1.bf16.msra.mxu0 0
        %1321 = vmatprep.subr.bf16.mxu0 0
        %1322 = vmatpush1.bf16.msra.mxu0 0
        %1323 = vmatprep.subr.bf16.mxu0 0
        %1324 = vmatpush1.bf16.msra.mxu0 0
        %1325 = vmatprep.subr.bf16.mxu0 0
        %1326 = vmatpush1.bf16.msra.mxu0 0
        %1327 = vmatprep.subr.bf16.mxu0 0
        %1328 = vmatpush1.bf16.msra.mxu0 0
        %1329 = vmatprep.subr.bf16.mxu0 0
        %1330 = vmatpush1.bf16.msra.mxu0 0
        %1331 = vmatprep.subr.bf16.mxu0 0
        %1332 = vmatpush1.bf16.msra.mxu0 0
        %1333 = vmatprep.subr.bf16.mxu0 0
        %1334 = vmatpush1.bf16.msra.mxu0 0
        %1335 = vmatprep.subr.bf16.mxu0 0
        %1336 = vmatpush1.bf16.msra.mxu0 0
        %1337 = vmatprep.subr.bf16.mxu0 0
        %1338 = vmatpush1.bf16.msra.mxu0 0
        %1339 = vmatprep.subr.bf16.mxu0 0
        %1340 = vmatpush1.bf16.msra.mxu0 0
        %1341 = vmatprep.subr.bf16.mxu0 0
        %1342 = vmatpush1.bf16.msra.mxu0 0
        %1343 = vmatprep.subr.bf16.mxu0 0
        %1344 = vmatpush1.bf16.msra.mxu0 0
        %1345 = vmatprep.mubr.bf16.mxu0 0
        %1346 = vmatmul.mubr.bf16.gmra.mrb[0].mxu0 %v1308
        %v1347 = vpop.f32.mrb[0].mxu0
        %v1348 = vadd.f32 0.0, %v1347
        %v1349 = vpop.f32.mrb[0].mxu0
        %v1350 = vpop.f32.mrb[0].mxu0
        %v1351 = vpop.f32.mrb[0].mxu0
        %1352 = vdwg.mxu0
        %v1354 = vsel %vm976, %v1213, 0
        %v1357 = vsel %vm1217, %v975, 0
        %1359 = vmatprep.subr.bf16.mxu0 0
        %1360 = vmatpush1.bf16.msra.mxu0 %v1357
        %1361 = vmatprep.subr.bf16.mxu0 0
        %1362 = vmatpush1.bf16.msra.mxu0 0
        %1363 = vmatprep.subr.bf16.mxu0 0
        %1364 = vmatpush1.bf16.msra.mxu0 0
        %1365 = vmatprep.subr.bf16.mxu0 0
        %1366 = vmatpush1.bf16.msra.mxu0 0
        %1367 = vmatprep.subr.bf16.mxu0 0
        %1368 = vmatpush1.bf16.msra.mxu0 0
        %1369 = vmatprep.subr.bf16.mxu0 0
        %1370 = vmatpush1.bf16.msra.mxu0 0
        %1371 = vmatprep.subr.bf16.mxu0 0
        %1372 = vmatpush1.bf16.msra.mxu0 0
        %1373 = vmatprep.subr.bf16.mxu0 0
        %1374 = vmatpush1.bf16.msra.mxu0 0
        %1375 = vmatprep.subr.bf16.mxu0 0
        %1376 = vmatpush1.bf16.msra.mxu0 0
        %1377 = vmatprep.subr.bf16.mxu0 0
        %1378 = vmatpush1.bf16.msra.mxu0 0
        %1379 = vmatprep.subr.bf16.mxu0 0
        %1380 = vmatpush1.bf16.msra.mxu0 0
        %1381 = vmatprep.subr.bf16.mxu0 0
        %1382 = vmatpush1.bf16.msra.mxu0 0
        %1383 = vmatprep.subr.bf16.mxu0 0
        %1384 = vmatpush1.bf16.msra.mxu0 0
        %1385 = vmatprep.subr.bf16.mxu0 0
        %1386 = vmatpush1.bf16.msra.mxu0 0
        %1387 = vmatprep.subr.bf16.mxu0 0
        %1388 = vmatpush1.bf16.msra.mxu0 0
        %1389 = vmatprep.subr.bf16.mxu0 0
        %1390 = vmatpush1.bf16.msra.mxu0 0
        %1391 = vmatprep.mubr.bf16.mxu0 0
        %1392 = vmatmul.mubr.bf16.gmra.mrb[0].mxu0 %v1354
        %v1393 = vpop.f32.mrb[0].mxu0
        %v1394 = vadd.f32 0.0, %v1393
        %v1395 = vpop.f32.mrb[0].mxu0
        %v1396 = vpop.f32.mrb[0].mxu0
        %v1397 = vpop.f32.mrb[0].mxu0
        %1398 = vdwg.mxu0
        %v1399 = vld [vmem:[#allocation8] sm:$0xf]
        %v1400 = vld [vmem:[#allocation8 + $0x4] sm:$0xf]
        %v1401 = vld [vmem:[#allocation8 + $0x8] sm:$0xf]
        %v1402 = vld [vmem:[#allocation8 + $0xc] sm:$0xf]
        %v1403 = vld [vmem:[#allocation10] sm:$0x1]
        %v1404 = vpack.c.bf16 %v1256, %v1256
        %v1406 = vsel %vm976, %v1404, 0
        %v1409 = vsel %vm1217, %v1399, 0
        %1411 = vmatprep.subr.bf16.mxu0 0
        %1412 = vmatpush1.bf16.msra.mxu0 %v1409
        %1413 = vmatprep.subr.bf16.mxu0 0
        %1414 = vmatpush1.bf16.msra.mxu0 0
        %1415 = vmatprep.subr.bf16.mxu0 0
        %1416 = vmatpush1.bf16.msra.mxu0 0
        %1417 = vmatprep.subr.bf16.mxu0 0
        %1418 = vmatpush1.bf16.msra.mxu0 0
        %1419 = vmatprep.subr.bf16.mxu0 0
        %1420 = vmatpush1.bf16.msra.mxu0 0
        %1421 = vmatprep.subr.bf16.mxu0 0
        %1422 = vmatpush1.bf16.msra.mxu0 0
        %1423 = vmatprep.subr.bf16.mxu0 0
        %1424 = vmatpush1.bf16.msra.mxu0 0
        %1425 = vmatprep.subr.bf16.mxu0 0
        %1426 = vmatpush1.bf16.msra.mxu0 0
        %1427 = vmatprep.subr.bf16.mxu0 0
        %1428 = vmatpush1.bf16.msra.mxu0 0
        %1429 = vmatprep.subr.bf16.mxu0 0
        %1430 = vmatpush1.bf16.msra.mxu0 0
        %1431 = vmatprep.subr.bf16.mxu0 0
        %1432 = vmatpush1.bf16.msra.mxu0 0
        %1433 = vmatprep.subr.bf16.mxu0 0
        %1434 = vmatpush1.bf16.msra.mxu0 0
        %1435 = vmatprep.subr.bf16.mxu0 0
        %1436 = vmatpush1.bf16.msra.mxu0 0
        %1437 = vmatprep.subr.bf16.mxu0 0
        %1438 = vmatpush1.bf16.msra.mxu0 0
        %1439 = vmatprep.subr.bf16.mxu0 0
        %1440 = vmatpush1.bf16.msra.mxu0 0
        %1441 = vmatprep.subr.bf16.mxu0 0
        %1442 = vmatpush1.bf16.msra.mxu0 0
        %1443 = vmatprep.mubr.bf16.mxu0 0
        %1444 = vmatmul.mubr.bf16.gmra.mrb[0].mxu0 %v1406
        %v1445 = vpop.f32.mrb[0].mxu0
        %v1446 = vadd.f32 0.0, %v1445
        %v1447 = vpop.f32.mrb[0].mxu0
        %v1448 = vpop.f32.mrb[0].mxu0
        %v1449 = vpop.f32.mrb[0].mxu0
        %1450 = vdwg.mxu0
        %v1452 = vlaneseq
        %v1453 = vshrl.u32 %v1452, 7
        %v1454 = vsub.s32 0, %v1453
        %v1455 = vrot.slane %v1403, %v1454
        %v1457 = vadd.f32 %v1455, %v1446
        %v1458 = vpack.c.bf16 %v1302, %v1302
        %v1460 = vsel %vm976, %v1458, 0
        %v1463 = vsel %vm1217, %v1400, 0
        %1465 = vmatprep.subr.bf16.mxu0 0
        %1466 = vmatpush1.bf16.msra.mxu0 %v1463
        %1467 = vmatprep.subr.bf16.mxu0 0
        %1468 = vmatpush1.bf16.msra.mxu0 0
        %1469 = vmatprep.subr.bf16.mxu0 0
        %1470 = vmatpush1.bf16.msra.mxu0 0
        %1471 = vmatprep.subr.bf16.mxu0 0
        %1472 = vmatpush1.bf16.msra.mxu0 0
        %1473 = vmatprep.subr.bf16.mxu0 0
        %1474 = vmatpush1.bf16.msra.mxu0 0
        %1475 = vmatprep.subr.bf16.mxu0 0
        %1476 = vmatpush1.bf16.msra.mxu0 0
        %1477 = vmatprep.subr.bf16.mxu0 0
        %1478 = vmatpush1.bf16.msra.mxu0 0
        %1479 = vmatprep.subr.bf16.mxu0 0
        %1480 = vmatpush1.bf16.msra.mxu0 0
        %1481 = vmatprep.subr.bf16.mxu0 0
        %1482 = vmatpush1.bf16.msra.mxu0 0
        %1483 = vmatprep.subr.bf16.mxu0 0
        %1484 = vmatpush1.bf16.msra.mxu0 0
        %1485 = vmatprep.subr.bf16.mxu0 0
        %1486 = vmatpush1.bf16.msra.mxu0 0
        %1487 = vmatprep.subr.bf16.mxu0 0
        %1488 = vmatpush1.bf16.msra.mxu0 0
        %1489 = vmatprep.subr.bf16.mxu0 0
        %1490 = vmatpush1.bf16.msra.mxu0 0
        %1491 = vmatprep.subr.bf16.mxu0 0
        %1492 = vmatpush1.bf16.msra.mxu0 0
        %1493 = vmatprep.subr.bf16.mxu0 0
        %1494 = vmatpush1.bf16.msra.mxu0 0
        %1495 = vmatprep.subr.bf16.mxu0 0
        %1496 = vmatpush1.bf16.msra.mxu0 0
        %1497 = vmatprep.mubr.bf16.mxu0 0
        %1498 = vmatmul.mubr.bf16.gmra.mrb[0].mxu0 %v1460
        %v1499 = vpop.f32.mrb[0].mxu0
        %v1500 = vadd.f32 0.0, %v1499
        %v1501 = vpop.f32.mrb[0].mxu0
        %v1502 = vpop.f32.mrb[0].mxu0
        %v1503 = vpop.f32.mrb[0].mxu0
        %1504 = vdwg.mxu0
        %v1505 = vadd.f32 %v1457, %v1500
        %v1506 = vpack.c.bf16 %v1348, %v1348
        %v1508 = vsel %vm976, %v1506, 0
        %v1511 = vsel %vm1217, %v1401, 0
        %1513 = vmatprep.subr.bf16.mxu0 0
        %1514 = vmatpush1.bf16.msra.mxu0 %v1511
        %1515 = vmatprep.subr.bf16.mxu0 0
        %1516 = vmatpush1.bf16.msra.mxu0 0
        %1517 = vmatprep.subr.bf16.mxu0 0
        %1518 = vmatpush1.bf16.msra.mxu0 0
        %1519 = vmatprep.subr.bf16.mxu0 0
        %1520 = vmatpush1.bf16.msra.mxu0 0
        %1521 = vmatprep.subr.bf16.mxu0 0
        %1522 = vmatpush1.bf16.msra.mxu0 0
        %1523 = vmatprep.subr.bf16.mxu0 0
        %1524 = vmatpush1.bf16.msra.mxu0 0
        %1525 = vmatprep.subr.bf16.mxu0 0
        %1526 = vmatpush1.bf16.msra.mxu0 0
        %1527 = vmatprep.subr.bf16.mxu0 0
        %1528 = vmatpush1.bf16.msra.mxu0 0
        %1529 = vmatprep.subr.bf16.mxu0 0
        %1530 = vmatpush1.bf16.msra.mxu0 0
        %1531 = vmatprep.subr.bf16.mxu0 0
        %1532 = vmatpush1.bf16.msra.mxu0 0
        %1533 = vmatprep.subr.bf16.mxu0 0
        %1534 = vmatpush1.bf16.msra.mxu0 0
        %1535 = vmatprep.subr.bf16.mxu0 0
        %1536 = vmatpush1.bf16.msra.mxu0 0
        %1537 = vmatprep.subr.bf16.mxu0 0
        %1538 = vmatpush1.bf16.msra.mxu0 0
        %1539 = vmatprep.subr.bf16.mxu0 0
        %1540 = vmatpush1.bf16.msra.mxu0 0
        %1541 = vmatprep.subr.bf16.mxu0 0
        %1542 = vmatpush1.bf16.msra.mxu0 0
        %1543 = vmatprep.subr.bf16.mxu0 0
        %1544 = vmatpush1.bf16.msra.mxu0 0
        %1545 = vmatprep.mubr.bf16.mxu0 0
        %1546 = vmatmul.mubr.bf16.gmra.mrb[0].mxu0 %v1508
        %v1547 = vpop.f32.mrb[0].mxu0
        %v1548 = vadd.f32 0.0, %v1547
        %v1549 = vpop.f32.mrb[0].mxu0
        %v1550 = vpop.f32.mrb[0].mxu0
        %v1551 = vpop.f32.mrb[0].mxu0
        %1552 = vdwg.mxu0
        %v1553 = vadd.f32 %v1505, %v1548
        %v1554 = vpack.c.bf16 %v1394, %v1394
        %v1556 = vsel %vm976, %v1554, 0
        %v1559 = vsel %vm1217, %v1402, 0
        %1561 = vmatprep.subr.bf16.mxu0 0
        %1562 = vmatpush1.bf16.msra.mxu0 %v1559
        %1563 = vmatprep.subr.bf16.mxu0 0
        %1564 = vmatpush1.bf16.msra.mxu0 0
        %1565 = vmatprep.subr.bf16.mxu0 0
        %1566 = vmatpush1.bf16.msra.mxu0 0
        %1567 = vmatprep.subr.bf16.mxu0 0
        %1568 = vmatpush1.bf16.msra.mxu0 0
        %1569 = vmatprep.subr.bf16.mxu0 0
        %1570 = vmatpush1.bf16.msra.mxu0 0
        %1571 = vmatprep.subr.bf16.mxu0 0
        %1572 = vmatpush1.bf16.msra.mxu0 0
        %1573 = vmatprep.subr.bf16.mxu0 0
        %1574 = vmatpush1.bf16.msra.mxu0 0
        %1575 = vmatprep.subr.bf16.mxu0 0
        %1576 = vmatpush1.bf16.msra.mxu0 0
        %1577 = vmatprep.subr.bf16.mxu0 0
        %1578 = vmatpush1.bf16.msra.mxu0 0
        %1579 = vmatprep.subr.bf16.mxu0 0
        %1580 = vmatpush1.bf16.msra.mxu0 0
        %1581 = vmatprep.subr.bf16.mxu0 0
        %1582 = vmatpush1.bf16.msra.mxu0 0
        %1583 = vmatprep.subr.bf16.mxu0 0
        %1584 = vmatpush1.bf16.msra.mxu0 0
        %1585 = vmatprep.subr.bf16.mxu0 0
        %1586 = vmatpush1.bf16.msra.mxu0 0
        %1587 = vmatprep.subr.bf16.mxu0 0
        %1588 = vmatpush1.bf16.msra.mxu0 0
        %1589 = vmatprep.subr.bf16.mxu0 0
        %1590 = vmatpush1.bf16.msra.mxu0 0
        %1591 = vmatprep.subr.bf16.mxu0 0
        %1592 = vmatpush1.bf16.msra.mxu0 0
        %1593 = vmatprep.mubr.bf16.mxu0 0
        %1594 = vmatmul.mubr.bf16.gmra.mrb[0].mxu0 %v1556
        %v1595 = vpop.f32.mrb[0].mxu0
        %v1596 = vadd.f32 0.0, %v1595
        %v1597 = vpop.f32.mrb[0].mxu0
        %v1598 = vpop.f32.mrb[0].mxu0
        %v1599 = vpop.f32.mrb[0].mxu0
        %1600 = vdwg.mxu0
        %v1601 = vadd.f32 %v1553, %v1596
        %v1602 = vadd.f32 %v696, %v1601
        %v1603 = vld [vmem:[#allocation11] sm:$0x1]
        %v1604 = vld [vmem:[#allocation13] sm:$0x1]
        %v1605 = vsel %vm700, %v1602, 0.0
        %1606 = vadd.xlane.f32.xlu0 %v1605
        %v1607 = vpop.xlane.xlu0 %1606
        %v1608 = vmul.f32 %v1607, %v704
        %v1609 = vsub.f32 %v1602, %v1608
        %v1610 = vmul.f32 %v1609, %v1609
        %v1611 = vsel %vm700, %v1610, 0.0
        %1612 = vadd.xlane.f32.xlu0 %v1611
        %v1613 = vpop.xlane.xlu0 %1612
        %v1614 = vmul.f32 %v1613, %v704
        %v1615 = vadd.f32 %v1614, 1e-05
        %v1616 = vrsqrt.pop %v1615
        %v1617 = vmul.f32 %v1609, %v1616
        %v1619 = vlaneseq
        %v1620 = vshrl.u32 %v1619, 7
        %v1621 = vsub.s32 0, %v1620
        %v1622 = vrot.slane %v1603, %v1621
        %v1624 = vmul.f32 %v1617, %v1622
        %v1626 = vlaneseq
        %v1627 = vshrl.u32 %v1626, 7
        %v1628 = vsub.s32 0, %v1627
        %v1629 = vrot.slane %v1604, %v1628
        %v1631 = vadd.f32 %v1624, %v1629
        %v1632 = vpack.c.bf16 %v1631, %v1631
        %v1633 = vld [vmem:[%s14] sm:$0xf]
        %v1634 = vld [vmem:[%s14 + $0x4] sm:$0xf]
        %v1635 = vld [vmem:[%s14 + $0x8] sm:$0xf]
        %v1636 = vld [vmem:[%s14 + $0xc] sm:$0xf]
        %v1637 = vld [vmem:[%s15] sm:$0x1]
        %v1639 = vlaneseq
        %v1640 = vshrl.u32 %v1639, 7
        %v1641 = vsub.s32 0, %v1640
        %v1642 = vrot.slane %v1637, %v1641
        %v1648 = vunpack.c.l.b16 %v1633
        %v1649 = vunpack.c.l.b16 %v1634
        %v1650 = vunpack.c.l.b16 %v1635
        %v1651 = vunpack.c.l.b16 %v1636
        %v1652 = vpack.c.b16 %v1649, %v1648
        %v1653 = vpack.c.b16 %v1651, %v1650
        %v1657 = vsel %vm700, %v1632, 0
        %1659 = vmatprep.subr.bf16.mxu0 0
        %1660 = vmatpush1.bf16.msra.mxu0 %v1652
        %1661 = vmatprep.subr.bf16.mxu0 0
        %1662 = vmatpush1.bf16.msra.mxu0 %v1653
        %1663 = vmatprep.subr.bf16.mxu0 0
        %1664 = vmatpush1.bf16.msra.mxu0 0
        %1665 = vmatprep.subr.bf16.mxu0 0
        %1666 = vmatpush1.bf16.msra.mxu0 0
        %1667 = vmatprep.subr.bf16.mxu0 0
        %1668 = vmatpush1.bf16.msra.mxu0 0
        %1669 = vmatprep.subr.bf16.mxu0 0
        %1670 = vmatpush1.bf16.msra.mxu0 0
        %1671 = vmatprep.subr.bf16.mxu0 0
        %1672 = vmatpush1.bf16.msra.mxu0 0
        %1673 = vmatprep.subr.bf16.mxu0 0
        %1674 = vmatpush1.bf16.msra.mxu0 0
        %1675 = vmatprep.subr.bf16.mxu0 0
        %1676 = vmatpush1.bf16.msra.mxu0 0
        %1677 = vmatprep.subr.bf16.mxu0 0
        %1678 = vmatpush1.bf16.msra.mxu0 0
        %1679 = vmatprep.subr.bf16.mxu0 0
        %1680 = vmatpush1.bf16.msra.mxu0 0
        %1681 = vmatprep.subr.bf16.mxu0 0
        %1682 = vmatpush1.bf16.msra.mxu0 0
        %1683 = vmatprep.subr.bf16.mxu0 0
        %1684 = vmatpush1.bf16.msra.mxu0 0
        %1685 = vmatprep.subr.bf16.mxu0 0
        %1686 = vmatpush1.bf16.msra.mxu0 0
        %1687 = vmatprep.subr.bf16.mxu0 0
        %1688 = vmatpush1.bf16.msra.mxu0 0
        %1689 = vmatprep.subr.bf16.mxu0 0
        %1690 = vmatpush1.bf16.msra.mxu0 0
        %1691 = vmatprep.mubr.bf16.mxu0 0
        %1692 = vmatmul.mubr.bf16.gmra.mrb[0].mxu0 %v1657
        %v1693 = vpop.f32.mrb[0].mxu0
        %v1694 = vadd.f32 %v1642, %v1693
        %v1695 = vpop.f32.mrb[0].mxu0
        %v1696 = vpop.f32.mrb[0].mxu0
        %v1697 = vpop.f32.mrb[0].mxu0
        %1698 = vdwg.mxu0
        %v1699 = vmul.f32 %v1694, 0.5
        %v1700 = vmul.f32 %v1694, 0.70710677
        %v1701 = verf.f32.pop %v1700
        %v1702 = vadd.f32 %v1701, 1.0
        %v1703 = vmul.f32 %v1699, %v1702
        %v1704 = vpack.c.bf16 %v1703, %v1703
        %v1705 = vld [vmem:[%s16] sm:$0xf]
        %v1706 = vld [vmem:[%s16 + $0x4] sm:$0xf]
        %v1707 = vld [vmem:[%s16 + $0x8] sm:$0xf]
        %v1708 = vld [vmem:[%s16 + $0xc] sm:$0xf]
        %v1709 = vld [vmem:[%s16 + $0x10] sm:$0xf]
        %v1710 = vld [vmem:[%s16 + $0x14] sm:$0xf]
        %v1711 = vld [vmem:[%s16 + $0x18] sm:$0xf]
        %v1712 = vld [vmem:[%s16 + $0x1c] sm:$0xf]
        %v1713 = vld [vmem:[%s16 + $0x20] sm:$0xf]
        %v1714 = vld [vmem:[%s16 + $0x24] sm:$0xf]
        %v1715 = vld [vmem:[%s16 + $0x28] sm:$0xf]
        %v1716 = vld [vmem:[%s16 + $0x2c] sm:$0xf]
        %v1717 = vld [vmem:[%s16 + $0x30] sm:$0xf]
        %v1718 = vld [vmem:[%s16 + $0x34] sm:$0xf]
        %v1719 = vld [vmem:[%s16 + $0x38] sm:$0xf]
        %v1720 = vld [vmem:[%s16 + $0x3c] sm:$0xf]
        %v1721 = vld [vmem:[%s17] sm:$0x1]
        %v1723 = vlaneseq
        %v1724 = vshrl.u32 %v1723, 7
        %v1725 = vsub.s32 0, %v1724
        %v1726 = vrot.slane %v1721, %v1725
        %v1744 = vunpack.c.l.b16 %v1705
        %v1745 = vunpack.c.l.b16 %v1706
        %v1746 = vunpack.c.l.b16 %v1707
        %v1747 = vunpack.c.l.b16 %v1708
        %v1748 = vunpack.c.l.b16 %v1709
        %v1749 = vunpack.c.l.b16 %v1710
        %v1750 = vunpack.c.l.b16 %v1711
        %v1751 = vunpack.c.l.b16 %v1712
        %v1752 = vunpack.c.l.b16 %v1713
        %v1753 = vunpack.c.l.b16 %v1714
        %v1754 = vunpack.c.l.b16 %v1715
        %v1755 = vunpack.c.l.b16 %v1716
        %v1756 = vunpack.c.l.b16 %v1717
        %v1757 = vunpack.c.l.b16 %v1718
        %v1758 = vunpack.c.l.b16 %v1719
        %v1759 = vunpack.c.l.b16 %v1720
        %v1760 = vpack.c.b16 %v1745, %v1744
        %v1761 = vpack.c.b16 %v1747, %v1746
        %v1762 = vpack.c.b16 %v1749, %v1748
        %v1763 = vpack.c.b16 %v1751, %v1750
        %v1764 = vpack.c.b16 %v1753, %v1752
        %v1765 = vpack.c.b16 %v1755, %v1754
        %v1766 = vpack.c.b16 %v1757, %v1756
        %v1767 = vpack.c.b16 %v1759, %v1758
        %1776 = vmatprep.subr.bf16.mxu0 0
        %1777 = vmatpush1.bf16.msra.mxu0 %v1760
        %1778 = vmatprep.subr.bf16.mxu0 0
        %1779 = vmatpush1.bf16.msra.mxu0 %v1761
        %1780 = vmatprep.subr.bf16.mxu0 0
        %1781 = vmatpush1.bf16.msra.mxu0 %v1762
        %1782 = vmatprep.subr.bf16.mxu0 0
        %1783 = vmatpush1.bf16.msra.mxu0 %v1763
        %1784 = vmatprep.subr.bf16.mxu0 0
        %1785 = vmatpush1.bf16.msra.mxu0 %v1764
        %1786 = vmatprep.subr.bf16.mxu0 0
        %1787 = vmatpush1.bf16.msra.mxu0 %v1765
        %1788 = vmatprep.subr.bf16.mxu0 0
        %1789 = vmatpush1.bf16.msra.mxu0 %v1766
        %1790 = vmatprep.subr.bf16.mxu0 0
        %1791 = vmatpush1.bf16.msra.mxu0 %v1767
        %1792 = vmatprep.subr.bf16.mxu0 0
        %1793 = vmatpush1.bf16.msra.mxu0 0
        %1794 = vmatprep.subr.bf16.mxu0 0
        %1795 = vmatpush1.bf16.msra.mxu0 0
        %1796 = vmatprep.subr.bf16.mxu0 0
        %1797 = vmatpush1.bf16.msra.mxu0 0
        %1798 = vmatprep.subr.bf16.mxu0 0
        %1799 = vmatpush1.bf16.msra.mxu0 0
        %1800 = vmatprep.subr.bf16.mxu0 0
        %1801 = vmatpush1.bf16.msra.mxu0 0
        %1802 = vmatprep.subr.bf16.mxu0 0
        %1803 = vmatpush1.bf16.msra.mxu0 0
        %1804 = vmatprep.subr.bf16.mxu0 0
        %1805 = vmatpush1.bf16.msra.mxu0 0
        %1806 = vmatprep.subr.bf16.mxu0 0
        %1807 = vmatpush1.bf16.msra.mxu0 0
        %1808 = vmatprep.mubr.bf16.mxu0 0
        %1809 = vmatmul.mubr.bf16.gmra.mrb[0].mxu0 %v1704
        %v1810 = vpop.f32.mrb[0].mxu0
        %v1811 = vadd.f32 %v1726, %v1810
        %v1812 = vpop.f32.mrb[0].mxu0
        %v1813 = vpop.f32.mrb[0].mxu0
        %v1814 = vpop.f32.mrb[0].mxu0
        %1815 = vdwg.mxu0
        %v1816 = vadd.f32 %v1602, %v1811
        %1817 = vst.msk [vmem:[%s682] sm:$0xff] %vm700, %v1816
        %s1818 = sand.u32 %s437, 1
        %s1819 = scalar_lea.sflag [#allocation4], %s1818
        %s1820 = sand.u32 %s437, 1
        %s1821 = smul.addr %s1820, 8
        %s1822 = scalar_lea.vmem [#allocation14], %s1821
        // Predicated region
        $region121: #{tpu_custom_call.1} parent=91 // pred_check
          %p1823 = pneg %p447
        $region122: #{tpu_custom_call.1} parent=91 // pred_check_branch
          %1825 = sbr.rel (%p1823) target = $region124
        $region123: #{tpu_custom_call.1} parent=91 // pred_region
          %s1827 = ssub.s32 128, 128
          %1828 = vsyncadd %s1819, %s1827
          %s1829 = smul.addr %s36, 128
          %s1830 = scalar_lea.hbm %s18, %s1829
          %s1832 = sshll.u32 %s1822, 4
          %s1833 = int_to_ptr.vmem [resolvable:$true] %s1832
          %1835 = dma.vmem_to_hbm [thread:$0]  %s1833, 128, %s1830, %s1819
        $region124: #{tpu_custom_call.1} parent=91 // pred_fallthru
          _
      $region92: #{tpu_custom_call.1} parent=5 // pred_fallthru
        _
      %p1836 = scmp.le.s32.totalorder 2, %s31
      // Predicated region
      $region125: #{tpu_custom_call.1} parent=5 // pred_check
        %p1837 = pneg %p1836
      $region126: #{tpu_custom_call.1} parent=5 // pred_check_branch
        %1839 = sbr.rel (%p1837) target = $region128
      $region127: #{tpu_custom_call.1} parent=5 // pred_region
        %s1840 = ssub.s32 %s31, 2
        // Predicated region
        $region129: #{tpu_custom_call.1} parent=127 // pred_check
          %p1841 = pneg %p453
        $region130: #{tpu_custom_call.1} parent=127 // pred_check_branch
          %1843 = sbr.rel (%p1841) target = $region132
        $region131: #{tpu_custom_call.1} parent=127 // pred_region
          %s1844 = sand.u32 %s438, 1
          %s1845 = scalar_lea.sflag [#allocation4], %s1844
          %s1846 = sand.u32 %s438, 1
          %s1847 = smul.addr %s1846, 8
          %s1848 = scalar_lea.vmem [#allocation14], %s1847
          %1849 = dma.done %s1845, 128
        $region132: #{tpu_custom_call.1} parent=127 // pred_fallthru
          _
      $region128: #{tpu_custom_call.1} parent=5 // pred_fallthru
        _
    $region6: #{tpu_custom_call.1} parent=1 // loop_footer
      %s35 = sadd.s32 1, %s31
    $region7: #{tpu_custom_call.1} parent=1 // loop_footer_branch
      %30 = sbr.rel target = $region3
    $region8: #{tpu_custom_call.1} parent=1 // loop_exit
      _
    %1850 = vsyncpa [#allocation3], 1
    %s1851 = scalar_lea.sflag [#allocation3], 1
    %1852 = vsyncpa %s1851, 1
    %1853 = vsyncpa [#allocation6], 1
    %1854 = vsyncpa [#allocation9], 1
    %1855 = vsyncpa [#allocation12], 1
    %1856 = vsyncpa [#allocation4], 1
    %s1857 = scalar_lea.sflag [#allocation4], 1
    %1858 = vsyncpa %s1857, 1

</llo_original>
